<compile_context>
chip_gen: v5e
topology: v5e:2x2
jax: 0.10.0
libtpu: 0.0.40
codegen_flags: <defaults>
</compile_context>

<pallas_src>
import math

import jax
import jax.numpy as jnp
from jax import lax
from jax.experimental import pallas as pl
from jax.experimental.pallas import tpu as pltpu

# ---------------- mini-BERT config ----------------
VOCAB = 128
TYPE_VOCAB = 2
MAX_POS = 64
HIDDEN = 32
N_HEADS = 4
HEAD_DIM = HIDDEN // N_HEADS
FFN = 64
N_LAYERS = 2
LN_EPS = 1e-12

VEC_ROWS = 8      # packed per-layer bias / LN vectors: one (8,128) vreg per layer
VEC_LANES = 128


# ---------------- in-kernel helpers ----------------
def _layernorm(x, g, b):
    mu = jnp.mean(x, axis=-1, keepdims=True)
    var = jnp.mean((x - mu) ** 2, axis=-1, keepdims=True)
    return (x - mu) * lax.rsqrt(var + LN_EPS) * g + b


# ---------------- fused forward kernel (one batch element per grid step) ----------------
def fused_bert_kernel(emb_ref, maskb_ref, onehot_ref, mc_ref,
                      misc_ref, wqkv_ref, wo_ref, w1_ref, w2_ref, vecs_ref,
                      o_ref, ctx_ref):
    # embeddings LayerNorm (emb = word+pos+type sum, computed in JAX glue)
    x = _layernorm(emb_ref[0], misc_ref[0:1, :], misc_ref[1:2, :])   # (S, H)
    mb = maskb_ref[0]                                                # (1, S) additive mask bias
    scale = 1.0 / math.sqrt(HEAD_DIM)

    for l in range(N_LAYERS):                 # static unroll; activation stays resident
        vec = vecs_ref[l]                     # (8, 128) packed biases / LN params
        bqkv = vec[0:1, 0:3 * HIDDEN]
        bo   = vec[1:2, 0:HIDDEN]
        g1   = vec[2:3, 0:HIDDEN]
        be1  = vec[3:4, 0:HIDDEN]
        b1   = vec[4:5, 0:FFN]
        b2   = vec[5:6, 0:HIDDEN]
        g2   = vec[6:7, 0:HIDDEN]
        be2  = vec[7:8, 0:HIDDEN]

        # fused QKV projection: single (S,H)x(H,3H) MXU push, bias added once
        qkv = jnp.dot(x, wqkv_ref[l], preferred_element_type=jnp.float32) + bqkv

        # per-head attention; each head's context written into the VMEM scratch
        # at a static lane offset (no concatenate, no per-head temporaries).
        for hh in range(N_HEADS):
            q = qkv[:, hh * HEAD_DIM:(hh + 1) * HEAD_DIM]
            k = qkv[:, HIDDEN + hh * HEAD_DIM:HIDDEN + (hh + 1) * HEAD_DIM]
            v = qkv[:, 2 * HIDDEN + hh * HEAD_DIM:2 * HIDDEN + (hh + 1) * HEAD_DIM]
            sc = lax.dot_general(q, k, (((1,), (1,)), ((), ())),
                                 preferred_element_type=jnp.float32)    # (S, S)
            sc = sc * scale + mb
            m = jnp.max(sc, axis=-1, keepdims=True)
            e = jnp.exp(sc - m)
            pr = e * pl.reciprocal(jnp.sum(e, axis=-1, keepdims=True), approx=True)
            ctx_ref[:, hh * HEAD_DIM:(hh + 1) * HEAD_DIM] = jnp.dot(
                pr, v, preferred_element_type=jnp.float32)

        attn_out = jnp.dot(ctx_ref[...], wo_ref[l],
                           preferred_element_type=jnp.float32) + bo
        x = _layernorm(x + attn_out, g1, be1)

        h = jnp.dot(x, w1_ref[l], preferred_element_type=jnp.float32) + b1
        # TODO(synk): HF 'gelu' is the exact erf form; erf has no guaranteed
        # Pallas-TPU lowering, so the tanh approximation is used here.
        h = jax.nn.gelu(h, approximate=True)
        ff = jnp.dot(h, w2_ref[l], preferred_element_type=jnp.float32) + b2
        x = _layernorm(x + ff, g2, be2)

    # classifier: masked one-hot gather of [CLS] rows rides the MXU,
    # fc + sigmoid + mask with a lane-dense (1, N) output.
    sents = jnp.dot(onehot_ref[0], x, preferred_element_type=jnp.float32)   # (N, H)
    fc_w = misc_ref[2:3, :]                                                 # (1, H)
    fc_b = misc_ref[3:4, 0:1]                                               # (1, 1)
    h = lax.dot_general(fc_w, sents, (((1,), (1,)), ((), ())),
                        preferred_element_type=jnp.float32)                 # (1, N)
    o_ref[0] = jax.nn.sigmoid(h + fc_b) * mc_ref[0]


# ---------------- parameter init (deterministic, synthetic) ----------------
def init_params(key):
    keys = iter(jax.random.split(key, 64))

    def nrm(shape):
        return 0.02 * jax.random.normal(next(keys), shape, dtype=jnp.float32)

    params = {
        "word_emb": nrm((VOCAB, HIDDEN)),
        "pos_emb": nrm((MAX_POS, HIDDEN)),
        "type_emb": nrm((TYPE_VOCAB, HIDDEN)),
        "emb_ln_g": jnp.ones((1, HIDDEN), jnp.float32),
        "emb_ln_b": jnp.zeros((1, HIDDEN), jnp.float32),
        "fc_w": nrm((HIDDEN, 1)),
        "fc_b": jnp.zeros((1, 1), jnp.float32),
        "layers": [],
    }
    for _ in range(N_LAYERS):
        params["layers"].append({
            "wq": nrm((HIDDEN, HIDDEN)), "bq": jnp.zeros((1, HIDDEN), jnp.float32),
            "wk": nrm((HIDDEN, HIDDEN)), "bk": jnp.zeros((1, HIDDEN), jnp.float32),
            "wv": nrm((HIDDEN, HIDDEN)), "bv": jnp.zeros((1, HIDDEN), jnp.float32),
            "wo": nrm((HIDDEN, HIDDEN)), "bo": jnp.zeros((1, HIDDEN), jnp.float32),
            "ln1_g": jnp.ones((1, HIDDEN), jnp.float32),
            "ln1_b": jnp.zeros((1, HIDDEN), jnp.float32),
            "w1": nrm((HIDDEN, FFN)), "b1": jnp.zeros((1, FFN), jnp.float32),
            "w2": nrm((FFN, HIDDEN)), "b2": jnp.zeros((1, HIDDEN), jnp.float32),
            "ln2_g": jnp.ones((1, HIDDEN), jnp.float32),
            "ln2_b": jnp.zeros((1, HIDDEN), jnp.float32),
        })
    return params


# ---------------- weight packing for the fused kernel ----------------
def pack_params(params):
    layers = params["layers"]
    wqkv = jnp.stack([jnp.concatenate([lp["wq"], lp["wk"], lp["wv"]], axis=1)
                      for lp in layers])                       # (L, H, 3H)
    wo = jnp.stack([lp["wo"] for lp in layers])                # (L, H, H)
    w1 = jnp.stack([lp["w1"] for lp in layers])                # (L, H, FFN)
    w2 = jnp.stack([lp["w2"] for lp in layers])                # (L, FFN, H)

    def row(v):
        v = v.reshape(-1)
        return jnp.pad(v, (0, VEC_LANES - v.shape[0]))

    vecs = jnp.stack([jnp.stack([
        row(jnp.concatenate([lp["bq"].reshape(-1), lp["bk"].reshape(-1),
                             lp["bv"].reshape(-1)])),
        row(lp["bo"]), row(lp["ln1_g"]), row(lp["ln1_b"]),
        row(lp["b1"]), row(lp["b2"]), row(lp["ln2_g"]), row(lp["ln2_b"]),
    ]) for lp in layers])                                      # (L, 8, 128)

    misc = jnp.stack([
        params["emb_ln_g"].reshape(-1),
        params["emb_ln_b"].reshape(-1),
        params["fc_w"].reshape(-1),
        jnp.pad(params["fc_b"].reshape(-1), (0, HIDDEN - 1)),
    ])                                                         # (4, H)
    return {"wqkv": wqkv, "wo": wo, "w1": w1, "w2": w2, "vecs": vecs, "misc": misc}


# ---------------- full forward (glue in plain JAX, compute in one Pallas call) ----------------
def bert_summarizer_forward(params, packed, x, segs, clss, mask, mask_clss):
    B, S = x.shape
    N = clss.shape[1]

    # embedding table gathers stay in plain JAX (glue)
    we = jnp.take(params["word_emb"], x.astype(jnp.int32), axis=0)       # (B, S, H)
    te = jnp.take(params["type_emb"], segs.astype(jnp.int32), axis=0)    # (B, S, H)
    pe = params["pos_emb"][:S][None]                                     # (1, S, H)
    emb = (we + te + pe).astype(jnp.float32)                             # pre-LN sum

    # additive attention mask bias, as in HF BERT: (1 - mask) * -10000
    mask_bias = ((1.0 - mask.astype(jnp.float32)) * -10000.0).reshape(B, 1, S)

    # masked one-hot gather matrix: folds `sents_vec * mask_clss` into the gather
    onehot = (clss.astype(jnp.int32)[:, :, None] ==
              jnp.arange(S, dtype=jnp.int32)[None, None, :]).astype(jnp.float32)
    onehot = onehot * mask_clss.astype(jnp.float32)[:, :, None]          # (B, N, S)
    mc = mask_clss.astype(jnp.float32).reshape(B, 1, N)                  # lane-dense mask

    scores = pl.pallas_call(
        fused_bert_kernel,
        out_shape=jax.ShapeDtypeStruct((B, 1, N), jnp.float32),
        grid=(B,),
        in_specs=[
            pl.BlockSpec((1, S, HIDDEN), lambda b: (b, 0, 0)),            # emb
            pl.BlockSpec((1, 1, S), lambda b: (b, 0, 0)),                 # mask bias
            pl.BlockSpec((1, N, S), lambda b: (b, 0, 0)),                 # masked one-hot
            pl.BlockSpec((1, 1, N), lambda b: (b, 0, 0)),                 # mask_clss row
            pl.BlockSpec((4, HIDDEN), lambda b: (0, 0)),                  # emb LN + fc
            pl.BlockSpec((N_LAYERS, HIDDEN, 3 * HIDDEN), lambda b: (0, 0, 0)),  # wqkv
            pl.BlockSpec((N_LAYERS, HIDDEN, HIDDEN), lambda b: (0, 0, 0)),      # wo
            pl.BlockSpec((N_LAYERS, HIDDEN, FFN), lambda b: (0, 0, 0)),         # w1
            pl.BlockSpec((N_LAYERS, FFN, HIDDEN), lambda b: (0, 0, 0)),         # w2
            pl.BlockSpec((N_LAYERS, VEC_ROWS, VEC_LANES), lambda b: (0, 0, 0)), # packed vecs
        ],
        out_specs=pl.BlockSpec((1, 1, N), lambda b: (b, 0, 0)),
        scratch_shapes=[pltpu.VMEM((S, HIDDEN), jnp.float32)],            # per-head ctx
        compiler_params=pltpu.CompilerParams(
            dimension_semantics=("parallel",)),    # v7x: one batch element per TensorCore
    )(emb, mask_bias, onehot, mc,
      packed["misc"], packed["wqkv"], packed["wo"],
      packed["w1"], packed["w2"], packed["vecs"])

    return scores[:, 0, :]                          # (B, N) == sent_scores


if __name__ == "__main__":
    key = jax.random.PRNGKey(0)
    kp, k1, k2 = jax.random.split(key, 3)

    B, S, N = 2, 16, 4
    params = init_params(kp)
    packed = pack_params(params)

    x = jax.random.randint(k1, (B, S), 0, VOCAB, dtype=jnp.int32)          # token ids
    segs = jax.random.randint(k2, (B, S), 0, TYPE_VOCAB, dtype=jnp.int32)  # token type ids
    clss = jnp.array([[0, 3, 7, 11], [0, 4, 8, 12]], dtype=jnp.int32)      # cls positions
    mask = jnp.ones((B, S), dtype=jnp.int32).at[1, 12:].set(0)             # attention mask
    mask_clss = jnp.array([[1, 1, 1, 0], [1, 1, 1, 1]], dtype=jnp.int32)   # valid sentences

    forward = jax.jit(bert_summarizer_forward)
    sent_scores = forward(params, packed, x, segs, clss, mask, mask_clss)
    jax.block_until_ready(sent_scores)
    assert sent_scores.shape == (B, N)
    print("KERNEL_OK")
</pallas_src>

<mosaic_0001>
module attributes {stable_mosaic.version = 11 : i64} {
  func.func @fused_bert_kernel(%arg0: i32, %arg1: memref<1x16x32xf32, #tpu.memory_space<vmem>>, %arg2: memref<1x1x16xf32, #tpu.memory_space<vmem>>, %arg3: memref<1x4x16xf32, #tpu.memory_space<vmem>>, %arg4: memref<1x1x4xf32, #tpu.memory_space<vmem>>, %arg5: memref<4x32xf32, #tpu.memory_space<vmem>>, %arg6: memref<2x32x96xf32, #tpu.memory_space<vmem>>, %arg7: memref<2x32x32xf32, #tpu.memory_space<vmem>>, %arg8: memref<2x32x64xf32, #tpu.memory_space<vmem>>, %arg9: memref<2x64x32xf32, #tpu.memory_space<vmem>>, %arg10: memref<2x8x128xf32, #tpu.memory_space<vmem>>, %arg11: memref<1x1x4xf32, #tpu.memory_space<vmem>>, %arg12: memref<16x32xf32, #tpu.memory_space<vmem>>) attributes {dimension_semantics = [#tpu.dimension_semantics<parallel>], iteration_bounds = array<i64: 2>, scalar_prefetch = 0 : i64, scratch_operands = 1 : i64, tpu.core_type = #tpu.core_type<tc>, window_params = [{transform_indices = @transform_0, window_bounds = array<i64: 1, 16, 32>}, {transform_indices = @transform_1, window_bounds = array<i64: 1, 1, 16>}, {transform_indices = @transform_2, window_bounds = array<i64: 1, 4, 16>}, {transform_indices = @transform_3, window_bounds = array<i64: 1, 1, 4>}, {pipeline_mode = #tpu.pipeline_mode<synchronous>, transform_indices = @transform_4, window_bounds = array<i64: 4, 32>}, {pipeline_mode = #tpu.pipeline_mode<synchronous>, transform_indices = @transform_5, window_bounds = array<i64: 2, 32, 96>}, {pipeline_mode = #tpu.pipeline_mode<synchronous>, transform_indices = @transform_6, window_bounds = array<i64: 2, 32, 32>}, {pipeline_mode = #tpu.pipeline_mode<synchronous>, transform_indices = @transform_7, window_bounds = array<i64: 2, 32, 64>}, {pipeline_mode = #tpu.pipeline_mode<synchronous>, transform_indices = @transform_8, window_bounds = array<i64: 2, 64, 32>}, {pipeline_mode = #tpu.pipeline_mode<synchronous>, transform_indices = @transform_9, window_bounds = array<i64: 2, 8, 128>}, {transform_indices = @transform_10, window_bounds = array<i64: 1, 1, 4>}]} {
    %c0 = arith.constant 0 : index
    %c0_0 = arith.constant 0 : index
    %c0_1 = arith.constant 0 : index
    %0 = vector.load %arg1[%c0, %c0_0, %c0_1] : memref<1x16x32xf32, #tpu.memory_space<vmem>>, vector<1x16x32xf32>
    %1 = vector.shape_cast %0 : vector<1x16x32xf32> to vector<16x32xf32>
    %c0_2 = arith.constant 0 : index
    %c0_3 = arith.constant 0 : index
    %2 = vector.load %arg5[%c0_2, %c0_3] : memref<4x32xf32, #tpu.memory_space<vmem>>, vector<1x32xf32>
    %c1 = arith.constant 1 : index
    %c0_4 = arith.constant 0 : index
    %3 = vector.load %arg5[%c1, %c0_4] : memref<4x32xf32, #tpu.memory_space<vmem>>, vector<1x32xf32>
    %cst = arith.constant dense<0.000000e+00> : vector<16xf32>
    %4 = vector.multi_reduction <add>, %1, %cst [1] : vector<16x32xf32> to vector<16xf32>
    %5 = vector.shape_cast %4 : vector<16xf32> to vector<16x1xf32>
    %cst_5 = arith.constant 3.200000e+01 : f32
    %6 = vector.broadcast %cst_5 : f32 to vector<16x1xf32>
    %7 = arith.divf %5, %6 : vector<16x1xf32>
    %8 = vector.broadcast %7 : vector<16x1xf32> to vector<16x32xf32>
    %9 = arith.subf %1, %8 : vector<16x32xf32>
    %10 = arith.mulf %9, %9 : vector<16x32xf32>
    %cst_6 = arith.constant dense<0.000000e+00> : vector<16xf32>
    %11 = vector.multi_reduction <add>, %10, %cst_6 [1] : vector<16x32xf32> to vector<16xf32>
    %12 = vector.shape_cast %11 : vector<16xf32> to vector<16x1xf32>
    %cst_7 = arith.constant 3.200000e+01 : f32
    %13 = vector.broadcast %cst_7 : f32 to vector<16x1xf32>
    %14 = arith.divf %12, %13 : vector<16x1xf32>
    %15 = vector.broadcast %7 : vector<16x1xf32> to vector<16x32xf32>
    %16 = arith.subf %1, %15 : vector<16x32xf32>
    %cst_8 = arith.constant 9.99999996E-13 : f32
    %17 = vector.broadcast %cst_8 : f32 to vector<16x1xf32>
    %18 = arith.addf %14, %17 : vector<16x1xf32>
    %19 = math.rsqrt %18 : vector<16x1xf32>
    %20 = vector.broadcast %19 : vector<16x1xf32> to vector<16x32xf32>
    %21 = arith.mulf %16, %20 : vector<16x32xf32>
    %22 = vector.broadcast %2 : vector<1x32xf32> to vector<16x32xf32>
    %23 = arith.mulf %21, %22 : vector<16x32xf32>
    %24 = vector.broadcast %3 : vector<1x32xf32> to vector<16x32xf32>
    %25 = arith.addf %23, %24 : vector<16x32xf32>
    %c0_9 = arith.constant 0 : index
    %c0_10 = arith.constant 0 : index
    %c0_11 = arith.constant 0 : index
    %26 = vector.load %arg2[%c0_9, %c0_10, %c0_11] : memref<1x1x16xf32, #tpu.memory_space<vmem>>, vector<1x1x16xf32>
    %27 = vector.shape_cast %26 : vector<1x1x16xf32> to vector<1x16xf32>
    %c0_12 = arith.constant 0 : index
    %c0_13 = arith.constant 0 : index
    %c0_14 = arith.constant 0 : index
    %28 = vector.load %arg10[%c0_12, %c0_13, %c0_14] : memref<2x8x128xf32, #tpu.memory_space<vmem>>, vector<1x8x128xf32>
    %29 = vector.shape_cast %28 : vector<1x8x128xf32> to vector<8x128xf32>
    %30 = vector.extract_strided_slice %29 {offsets = [0, 0], sizes = [1, 96], strides = [1, 1]} : vector<8x128xf32> to vector<1x96xf32>
    %31 = vector.extract_strided_slice %29 {offsets = [1, 0], sizes = [1, 32], strides = [1, 1]} : vector<8x128xf32> to vector<1x32xf32>
    %32 = vector.extract_strided_slice %29 {offsets = [2, 0], sizes = [1, 32], strides = [1, 1]} : vector<8x128xf32> to vector<1x32xf32>
    %33 = vector.extract_strided_slice %29 {offsets = [3, 0], sizes = [1, 32], strides = [1, 1]} : vector<8x128xf32> to vector<1x32xf32>
    %34 = vector.extract_strided_slice %29 {offsets = [4, 0], sizes = [1, 64], strides = [1, 1]} : vector<8x128xf32> to vector<1x64xf32>
    %35 = vector.extract_strided_slice %29 {offsets = [5, 0], sizes = [1, 32], strides = [1, 1]} : vector<8x128xf32> to vector<1x32xf32>
    %36 = vector.extract_strided_slice %29 {offsets = [6, 0], sizes = [1, 32], strides = [1, 1]} : vector<8x128xf32> to vector<1x32xf32>
    %37 = vector.extract_strided_slice %29 {offsets = [7, 0], sizes = [1, 32], strides = [1, 1]} : vector<8x128xf32> to vector<1x32xf32>
    %c0_15 = arith.constant 0 : index
    %c0_16 = arith.constant 0 : index
    %c0_17 = arith.constant 0 : index
    %38 = vector.load %arg6[%c0_15, %c0_16, %c0_17] : memref<2x32x96xf32, #tpu.memory_space<vmem>>, vector<1x32x96xf32>
    %39 = vector.shape_cast %38 : vector<1x32x96xf32> to vector<32x96xf32>
    %cst_18 = arith.constant dense<0.000000e+00> : vector<16x96xf32>
    %40 = tpu.matmul %25, %39, %cst_18 {dimension_numbers = #tpu.dot_dimension_numbers<[1], [0], [0], [1], [0, 0, 1, 1], [], []>} : vector<16x32xf32>, vector<32x96xf32>, vector<16x96xf32> -> vector<16x96xf32>
    %41 = vector.broadcast %30 : vector<1x96xf32> to vector<16x96xf32>
    %42 = arith.addf %40, %41 : vector<16x96xf32>
    %43 = vector.extract_strided_slice %42 {offsets = [0, 0], sizes = [16, 8], strides = [1, 1]} : vector<16x96xf32> to vector<16x8xf32>
    %44 = vector.extract_strided_slice %42 {offsets = [0, 32], sizes = [16, 8], strides = [1, 1]} : vector<16x96xf32> to vector<16x8xf32>
    %45 = vector.extract_strided_slice %42 {offsets = [0, 64], sizes = [16, 8], strides = [1, 1]} : vector<16x96xf32> to vector<16x8xf32>
    %cst_19 = arith.constant dense<0.000000e+00> : vector<16x16xf32>
    %46 = tpu.matmul %43, %44, %cst_19 {dimension_numbers = #tpu.dot_dimension_numbers<[1], [1], [0], [0], [0, 0, 1, 0], [], []>} : vector<16x8xf32>, vector<16x8xf32>, vector<16x16xf32> -> vector<16x16xf32>
    %cst_20 = arith.constant 0.353553385 : f32
    %47 = vector.broadcast %cst_20 : f32 to vector<16x16xf32>
    %48 = arith.mulf %46, %47 : vector<16x16xf32>
    %49 = vector.broadcast %27 : vector<1x16xf32> to vector<16x16xf32>
    %50 = arith.addf %48, %49 : vector<16x16xf32>
    %cst_21 = arith.constant dense<0xFF800000> : vector<16xf32>
    %51 = vector.multi_reduction <maximumf>, %50, %cst_21 [1] : vector<16x16xf32> to vector<16xf32>
    %52 = vector.shape_cast %51 : vector<16xf32> to vector<16x1xf32>
    %53 = vector.broadcast %52 : vector<16x1xf32> to vector<16x16xf32>
    %54 = arith.subf %50, %53 : vector<16x16xf32>
    %55 = math.exp %54 : vector<16x16xf32>
    %cst_22 = arith.constant dense<0.000000e+00> : vector<16xf32>
    %56 = vector.multi_reduction <add>, %55, %cst_22 [1] : vector<16x16xf32> to vector<16xf32>
    %57 = vector.shape_cast %56 : vector<16xf32> to vector<16x1xf32>
    %58 = tpu.reciprocal %57 {approx = true} : vector<16x1xf32> -> vector<16x1xf32>
    %59 = vector.broadcast %58 : vector<16x1xf32> to vector<16x16xf32>
    %60 = arith.mulf %55, %59 : vector<16x16xf32>
    %cst_23 = arith.constant dense<0.000000e+00> : vector<16x8xf32>
    %61 = tpu.matmul %60, %45, %cst_23 {dimension_numbers = #tpu.dot_dimension_numbers<[1], [0], [0], [1], [0, 0, 1, 1], [], []>} : vector<16x16xf32>, vector<16x8xf32>, vector<16x8xf32> -> vector<16x8xf32>
    %c0_24 = arith.constant 0 : index
    %c0_25 = arith.constant 0 : index
    %62 = vector.load %arg12[%c0_24, %c0_25] : memref<16x32xf32, #tpu.memory_space<vmem>>, vector<16x8xf32>
    tpu.vector_store %arg12[%c0_24, %c0_25], %61 {strides = array<i32>} : memref<16x32xf32, #tpu.memory_space<vmem>>, vector<16x8xf32>,
    %63 = vector.extract_strided_slice %42 {offsets = [0, 8], sizes = [16, 8], strides = [1, 1]} : vector<16x96xf32> to vector<16x8xf32>
    %64 = vector.extract_strided_slice %42 {offsets = [0, 40], sizes = [16, 8], strides = [1, 1]} : vector<16x96xf32> to vector<16x8xf32>
    %65 = vector.extract_strided_slice %42 {offsets = [0, 72], sizes = [16, 8], strides = [1, 1]} : vector<16x96xf32> to vector<16x8xf32>
    %cst_26 = arith.constant dense<0.000000e+00> : vector<16x16xf32>
    %66 = tpu.matmul %63, %64, %cst_26 {dimension_numbers = #tpu.dot_dimension_numbers<[1], [1], [0], [0], [0, 0, 1, 0], [], []>} : vector<16x8xf32>, vector<16x8xf32>, vector<16x16xf32> -> vector<16x16xf32>
    %cst_27 = arith.constant 0.353553385 : f32
    %67 = vector.broadcast %cst_27 : f32 to vector<16x16xf32>
    %68 = arith.mulf %66, %67 : vector<16x16xf32>
    %69 = vector.broadcast %27 : vector<1x16xf32> to vector<16x16xf32>
    %70 = arith.addf %68, %69 : vector<16x16xf32>
    %cst_28 = arith.constant dense<0xFF800000> : vector<16xf32>
    %71 = vector.multi_reduction <maximumf>, %70, %cst_28 [1] : vector<16x16xf32> to vector<16xf32>
    %72 = vector.shape_cast %71 : vector<16xf32> to vector<16x1xf32>
    %73 = vector.broadcast %72 : vector<16x1xf32> to vector<16x16xf32>
    %74 = arith.subf %70, %73 : vector<16x16xf32>
    %75 = math.exp %74 : vector<16x16xf32>
    %cst_29 = arith.constant dense<0.000000e+00> : vector<16xf32>
    %76 = vector.multi_reduction <add>, %75, %cst_29 [1] : vector<16x16xf32> to vector<16xf32>
    %77 = vector.shape_cast %76 : vector<16xf32> to vector<16x1xf32>
    %78 = tpu.reciprocal %77 {approx = true} : vector<16x1xf32> -> vector<16x1xf32>
    %79 = vector.broadcast %78 : vector<16x1xf32> to vector<16x16xf32>
    %80 = arith.mulf %75, %79 : vector<16x16xf32>
    %cst_30 = arith.constant dense<0.000000e+00> : vector<16x8xf32>
    %81 = tpu.matmul %80, %65, %cst_30 {dimension_numbers = #tpu.dot_dimension_numbers<[1], [0], [0], [1], [0, 0, 1, 1], [], []>} : vector<16x16xf32>, vector<16x8xf32>, vector<16x8xf32> -> vector<16x8xf32>
    %c0_31 = arith.constant 0 : index
    %c8 = arith.constant 8 : index
    %82 = vector.load %arg12[%c0_31, %c8] : memref<16x32xf32, #tpu.memory_space<vmem>>, vector<16x8xf32>
    tpu.vector_store %arg12[%c0_31, %c8], %81 {strides = array<i32>} : memref<16x32xf32, #tpu.memory_space<vmem>>, vector<16x8xf32>,
    %83 = vector.extract_strided_slice %42 {offsets = [0, 16], sizes = [16, 8], strides = [1, 1]} : vector<16x96xf32> to vector<16x8xf32>
    %84 = vector.extract_strided_slice %42 {offsets = [0, 48], sizes = [16, 8], strides = [1, 1]} : vector<16x96xf32> to vector<16x8xf32>
    %85 = vector.extract_strided_slice %42 {offsets = [0, 80], sizes = [16, 8], strides = [1, 1]} : vector<16x96xf32> to vector<16x8xf32>
    %cst_32 = arith.constant dense<0.000000e+00> : vector<16x16xf32>
    %86 = tpu.matmul %83, %84, %cst_32 {dimension_numbers = #tpu.dot_dimension_numbers<[1], [1], [0], [0], [0, 0, 1, 0], [], []>} : vector<16x8xf32>, vector<16x8xf32>, vector<16x16xf32> -> vector<16x16xf32>
    %cst_33 = arith.constant 0.353553385 : f32
    %87 = vector.broadcast %cst_33 : f32 to vector<16x16xf32>
    %88 = arith.mulf %86, %87 : vector<16x16xf32>
    %89 = vector.broadcast %27 : vector<1x16xf32> to vector<16x16xf32>
    %90 = arith.addf %88, %89 : vector<16x16xf32>
    %cst_34 = arith.constant dense<0xFF800000> : vector<16xf32>
    %91 = vector.multi_reduction <maximumf>, %90, %cst_34 [1] : vector<16x16xf32> to vector<16xf32>
    %92 = vector.shape_cast %91 : vector<16xf32> to vector<16x1xf32>
    %93 = vector.broadcast %92 : vector<16x1xf32> to vector<16x16xf32>
    %94 = arith.subf %90, %93 : vector<16x16xf32>
    %95 = math.exp %94 : vector<16x16xf32>
    %cst_35 = arith.constant dense<0.000000e+00> : vector<16xf32>
    %96 = vector.multi_reduction <add>, %95, %cst_35 [1] : vector<16x16xf32> to vector<16xf32>
    %97 = vector.shape_cast %96 : vector<16xf32> to vector<16x1xf32>
    %98 = tpu.reciprocal %97 {approx = true} : vector<16x1xf32> -> vector<16x1xf32>
    %99 = vector.broadcast %98 : vector<16x1xf32> to vector<16x16xf32>
    %100 = arith.mulf %95, %99 : vector<16x16xf32>
    %cst_36 = arith.constant dense<0.000000e+00> : vector<16x8xf32>
    %101 = tpu.matmul %100, %85, %cst_36 {dimension_numbers = #tpu.dot_dimension_numbers<[1], [0], [0], [1], [0, 0, 1, 1], [], []>} : vector<16x16xf32>, vector<16x8xf32>, vector<16x8xf32> -> vector<16x8xf32>
    %c0_37 = arith.constant 0 : index
    %c16 = arith.constant 16 : index
    %102 = vector.load %arg12[%c0_37, %c16] : memref<16x32xf32, #tpu.memory_space<vmem>>, vector<16x8xf32>
    tpu.vector_store %arg12[%c0_37, %c16], %101 {strides = array<i32>} : memref<16x32xf32, #tpu.memory_space<vmem>>, vector<16x8xf32>,
    %103 = vector.extract_strided_slice %42 {offsets = [0, 24], sizes = [16, 8], strides = [1, 1]} : vector<16x96xf32> to vector<16x8xf32>
    %104 = vector.extract_strided_slice %42 {offsets = [0, 56], sizes = [16, 8], strides = [1, 1]} : vector<16x96xf32> to vector<16x8xf32>
    %105 = vector.extract_strided_slice %42 {offsets = [0, 88], sizes = [16, 8], strides = [1, 1]} : vector<16x96xf32> to vector<16x8xf32>
    %cst_38 = arith.constant dense<0.000000e+00> : vector<16x16xf32>
    %106 = tpu.matmul %103, %104, %cst_38 {dimension_numbers = #tpu.dot_dimension_numbers<[1], [1], [0], [0], [0, 0, 1, 0], [], []>} : vector<16x8xf32>, vector<16x8xf32>, vector<16x16xf32> -> vector<16x16xf32>
    %cst_39 = arith.constant 0.353553385 : f32
    %107 = vector.broadcast %cst_39 : f32 to vector<16x16xf32>
    %108 = arith.mulf %106, %107 : vector<16x16xf32>
    %109 = vector.broadcast %27 : vector<1x16xf32> to vector<16x16xf32>
    %110 = arith.addf %108, %109 : vector<16x16xf32>
    %cst_40 = arith.constant dense<0xFF800000> : vector<16xf32>
    %111 = vector.multi_reduction <maximumf>, %110, %cst_40 [1] : vector<16x16xf32> to vector<16xf32>
    %112 = vector.shape_cast %111 : vector<16xf32> to vector<16x1xf32>
    %113 = vector.broadcast %112 : vector<16x1xf32> to vector<16x16xf32>
    %114 = arith.subf %110, %113 : vector<16x16xf32>
    %115 = math.exp %114 : vector<16x16xf32>
    %cst_41 = arith.constant dense<0.000000e+00> : vector<16xf32>
    %116 = vector.multi_reduction <add>, %115, %cst_41 [1] : vector<16x16xf32> to vector<16xf32>
    %117 = vector.shape_cast %116 : vector<16xf32> to vector<16x1xf32>
    %118 = tpu.reciprocal %117 {approx = true} : vector<16x1xf32> -> vector<16x1xf32>
    %119 = vector.broadcast %118 : vector<16x1xf32> to vector<16x16xf32>
    %120 = arith.mulf %115, %119 : vector<16x16xf32>
    %cst_42 = arith.constant dense<0.000000e+00> : vector<16x8xf32>
    %121 = tpu.matmul %120, %105, %cst_42 {dimension_numbers = #tpu.dot_dimension_numbers<[1], [0], [0], [1], [0, 0, 1, 1], [], []>} : vector<16x16xf32>, vector<16x8xf32>, vector<16x8xf32> -> vector<16x8xf32>
    %c0_43 = arith.constant 0 : index
    %c24 = arith.constant 24 : index
    %122 = vector.load %arg12[%c0_43, %c24] : memref<16x32xf32, #tpu.memory_space<vmem>>, vector<16x8xf32>
    tpu.vector_store %arg12[%c0_43, %c24], %121 {strides = array<i32>} : memref<16x32xf32, #tpu.memory_space<vmem>>, vector<16x8xf32>,
    %c0_44 = arith.constant 0 : index
    %c0_45 = arith.constant 0 : index
    %123 = vector.load %arg12[%c0_44, %c0_45] : memref<16x32xf32, #tpu.memory_space<vmem>>, vector<16x32xf32>
    %c0_46 = arith.constant 0 : index
    %c0_47 = arith.constant 0 : index
    %c0_48 = arith.constant 0 : index
    %124 = vector.load %arg7[%c0_46, %c0_47, %c0_48] : memref<2x32x32xf32, #tpu.memory_space<vmem>>, vector<1x32x32xf32>
    %125 = vector.shape_cast %124 : vector<1x32x32xf32> to vector<32x32xf32>
    %cst_49 = arith.constant dense<0.000000e+00> : vector<16x32xf32>
    %126 = tpu.matmul %123, %125, %cst_49 {dimension_numbers = #tpu.dot_dimension_numbers<[1], [0], [0], [1], [0, 0, 1, 1], [], []>} : vector<16x32xf32>, vector<32x32xf32>, vector<16x32xf32> -> vector<16x32xf32>
    %127 = vector.broadcast %31 : vector<1x32xf32> to vector<16x32xf32>
    %128 = arith.addf %126, %127 : vector<16x32xf32>
    %129 = arith.addf %25, %128 : vector<16x32xf32>
    %cst_50 = arith.constant dense<0.000000e+00> : vector<16xf32>
    %130 = vector.multi_reduction <add>, %129, %cst_50 [1] : vector<16x32xf32> to vector<16xf32>
    %131 = vector.shape_cast %130 : vector<16xf32> to vector<16x1xf32>
    %cst_51 = arith.constant 3.200000e+01 : f32
    %132 = vector.broadcast %cst_51 : f32 to vector<16x1xf32>
    %133 = arith.divf %131, %132 : vector<16x1xf32>
    %134 = vector.broadcast %133 : vector<16x1xf32> to vector<16x32xf32>
    %135 = arith.subf %129, %134 : vector<16x32xf32>
    %136 = arith.mulf %135, %135 : vector<16x32xf32>
    %cst_52 = arith.constant dense<0.000000e+00> : vector<16xf32>
    %137 = vector.multi_reduction <add>, %136, %cst_52 [1] : vector<16x32xf32> to vector<16xf32>
    %138 = vector.shape_cast %137 : vector<16xf32> to vector<16x1xf32>
    %cst_53 = arith.constant 3.200000e+01 : f32
    %139 = vector.broadcast %cst_53 : f32 to vector<16x1xf32>
    %140 = arith.divf %138, %139 : vector<16x1xf32>
    %141 = vector.broadcast %133 : vector<16x1xf32> to vector<16x32xf32>
    %142 = arith.subf %129, %141 : vector<16x32xf32>
    %cst_54 = arith.constant 9.99999996E-13 : f32
    %143 = vector.broadcast %cst_54 : f32 to vector<16x1xf32>
    %144 = arith.addf %140, %143 : vector<16x1xf32>
    %145 = math.rsqrt %144 : vector<16x1xf32>
    %146 = vector.broadcast %145 : vector<16x1xf32> to vector<16x32xf32>
    %147 = arith.mulf %142, %146 : vector<16x32xf32>
    %148 = vector.broadcast %32 : vector<1x32xf32> to vector<16x32xf32>
    %149 = arith.mulf %147, %148 : vector<16x32xf32>
    %150 = vector.broadcast %33 : vector<1x32xf32> to vector<16x32xf32>
    %151 = arith.addf %149, %150 : vector<16x32xf32>
    %c0_55 = arith.constant 0 : index
    %c0_56 = arith.constant 0 : index
    %c0_57 = arith.constant 0 : index
    %152 = vector.load %arg8[%c0_55, %c0_56, %c0_57] : memref<2x32x64xf32, #tpu.memory_space<vmem>>, vector<1x32x64xf32>
    %153 = vector.shape_cast %152 : vector<1x32x64xf32> to vector<32x64xf32>
    %cst_58 = arith.constant dense<0.000000e+00> : vector<16x64xf32>
    %154 = tpu.matmul %151, %153, %cst_58 {dimension_numbers = #tpu.dot_dimension_numbers<[1], [0], [0], [1], [0, 0, 1, 1], [], []>} : vector<16x32xf32>, vector<32x64xf32>, vector<16x64xf32> -> vector<16x64xf32>
    %155 = vector.broadcast %34 : vector<1x64xf32> to vector<16x64xf32>
    %156 = arith.addf %154, %155 : vector<16x64xf32>
    %157 = arith.mulf %156, %156 : vector<16x64xf32>
    %158 = arith.mulf %156, %157 : vector<16x64xf32>
    %cst_59 = arith.constant 4.471500e-02 : f32
    %159 = vector.broadcast %cst_59 : f32 to vector<16x64xf32>
    %160 = arith.mulf %159, %158 : vector<16x64xf32>
    %161 = arith.addf %156, %160 : vector<16x64xf32>
    %cst_60 = arith.constant 0.797884583 : f32
    %162 = vector.broadcast %cst_60 : f32 to vector<16x64xf32>
    %163 = arith.mulf %162, %161 : vector<16x64xf32>
    %164 = math.tanh %163 : vector<16x64xf32>
    %cst_61 = arith.constant 1.000000e+00 : f32
    %165 = vector.broadcast %cst_61 : f32 to vector<16x64xf32>
    %166 = arith.addf %165, %164 : vector<16x64xf32>
    %cst_62 = arith.constant 5.000000e-01 : f32
    %167 = vector.broadcast %cst_62 : f32 to vector<16x64xf32>
    %168 = arith.mulf %167, %166 : vector<16x64xf32>
    %169 = arith.mulf %156, %168 : vector<16x64xf32>
    %c0_63 = arith.constant 0 : index
    %c0_64 = arith.constant 0 : index
    %c0_65 = arith.constant 0 : index
    %170 = vector.load %arg9[%c0_63, %c0_64, %c0_65] : memref<2x64x32xf32, #tpu.memory_space<vmem>>, vector<1x64x32xf32>
    %171 = vector.shape_cast %170 : vector<1x64x32xf32> to vector<64x32xf32>
    %cst_66 = arith.constant dense<0.000000e+00> : vector<16x32xf32>
    %172 = tpu.matmul %169, %171, %cst_66 {dimension_numbers = #tpu.dot_dimension_numbers<[1], [0], [0], [1], [0, 0, 1, 1], [], []>} : vector<16x64xf32>, vector<64x32xf32>, vector<16x32xf32> -> vector<16x32xf32>
    %173 = vector.broadcast %35 : vector<1x32xf32> to vector<16x32xf32>
    %174 = arith.addf %172, %173 : vector<16x32xf32>
    %175 = arith.addf %151, %174 : vector<16x32xf32>
    %cst_67 = arith.constant dense<0.000000e+00> : vector<16xf32>
    %176 = vector.multi_reduction <add>, %175, %cst_67 [1] : vector<16x32xf32> to vector<16xf32>
    %177 = vector.shape_cast %176 : vector<16xf32> to vector<16x1xf32>
    %cst_68 = arith.constant 3.200000e+01 : f32
    %178 = vector.broadcast %cst_68 : f32 to vector<16x1xf32>
    %179 = arith.divf %177, %178 : vector<16x1xf32>
    %180 = vector.broadcast %179 : vector<16x1xf32> to vector<16x32xf32>
    %181 = arith.subf %175, %180 : vector<16x32xf32>
    %182 = arith.mulf %181, %181 : vector<16x32xf32>
    %cst_69 = arith.constant dense<0.000000e+00> : vector<16xf32>
    %183 = vector.multi_reduction <add>, %182, %cst_69 [1] : vector<16x32xf32> to vector<16xf32>
    %184 = vector.shape_cast %183 : vector<16xf32> to vector<16x1xf32>
    %cst_70 = arith.constant 3.200000e+01 : f32
    %185 = vector.broadcast %cst_70 : f32 to vector<16x1xf32>
    %186 = arith.divf %184, %185 : vector<16x1xf32>
    %187 = vector.broadcast %179 : vector<16x1xf32> to vector<16x32xf32>
    %188 = arith.subf %175, %187 : vector<16x32xf32>
    %cst_71 = arith.constant 9.99999996E-13 : f32
    %189 = vector.broadcast %cst_71 : f32 to vector<16x1xf32>
    %190 = arith.addf %186, %189 : vector<16x1xf32>
    %191 = math.rsqrt %190 : vector<16x1xf32>
    %192 = vector.broadcast %191 : vector<16x1xf32> to vector<16x32xf32>
    %193 = arith.mulf %188, %192 : vector<16x32xf32>
    %194 = vector.broadcast %36 : vector<1x32xf32> to vector<16x32xf32>
    %195 = arith.mulf %193, %194 : vector<16x32xf32>
    %196 = vector.broadcast %37 : vector<1x32xf32> to vector<16x32xf32>
    %197 = arith.addf %195, %196 : vector<16x32xf32>
    %c1_72 = arith.constant 1 : index
    %c0_73 = arith.constant 0 : index
    %c0_74 = arith.constant 0 : index
    %198 = vector.load %arg10[%c1_72, %c0_73, %c0_74] : memref<2x8x128xf32, #tpu.memory_space<vmem>>, vector<1x8x128xf32>
    %199 = vector.shape_cast %198 : vector<1x8x128xf32> to vector<8x128xf32>
    %200 = vector.extract_strided_slice %199 {offsets = [0, 0], sizes = [1, 96], strides = [1, 1]} : vector<8x128xf32> to vector<1x96xf32>
    %201 = vector.extract_strided_slice %199 {offsets = [1, 0], sizes = [1, 32], strides = [1, 1]} : vector<8x128xf32> to vector<1x32xf32>
    %202 = vector.extract_strided_slice %199 {offsets = [2, 0], sizes = [1, 32], strides = [1, 1]} : vector<8x128xf32> to vector<1x32xf32>
    %203 = vector.extract_strided_slice %199 {offsets = [3, 0], sizes = [1, 32], strides = [1, 1]} : vector<8x128xf32> to vector<1x32xf32>
    %204 = vector.extract_strided_slice %199 {offsets = [4, 0], sizes = [1, 64], strides = [1, 1]} : vector<8x128xf32> to vector<1x64xf32>
    %205 = vector.extract_strided_slice %199 {offsets = [5, 0], sizes = [1, 32], strides = [1, 1]} : vector<8x128xf32> to vector<1x32xf32>
    %206 = vector.extract_strided_slice %199 {offsets = [6, 0], sizes = [1, 32], strides = [1, 1]} : vector<8x128xf32> to vector<1x32xf32>
    %207 = vector.extract_strided_slice %199 {offsets = [7, 0], sizes = [1, 32], strides = [1, 1]} : vector<8x128xf32> to vector<1x32xf32>
    %c1_75 = arith.constant 1 : index
    %c0_76 = arith.constant 0 : index
    %c0_77 = arith.constant 0 : index
    %208 = vector.load %arg6[%c1_75, %c0_76, %c0_77] : memref<2x32x96xf32, #tpu.memory_space<vmem>>, vector<1x32x96xf32>
    %209 = vector.shape_cast %208 : vector<1x32x96xf32> to vector<32x96xf32>
    %cst_78 = arith.constant dense<0.000000e+00> : vector<16x96xf32>
    %210 = tpu.matmul %197, %209, %cst_78 {dimension_numbers = #tpu.dot_dimension_numbers<[1], [0], [0], [1], [0, 0, 1, 1], [], []>} : vector<16x32xf32>, vector<32x96xf32>, vector<16x96xf32> -> vector<16x96xf32>
    %211 = vector.broadcast %200 : vector<1x96xf32> to vector<16x96xf32>
    %212 = arith.addf %210, %211 : vector<16x96xf32>
    %213 = vector.extract_strided_slice %212 {offsets = [0, 0], sizes = [16, 8], strides = [1, 1]} : vector<16x96xf32> to vector<16x8xf32>
    %214 = vector.extract_strided_slice %212 {offsets = [0, 32], sizes = [16, 8], strides = [1, 1]} : vector<16x96xf32> to vector<16x8xf32>
    %215 = vector.extract_strided_slice %212 {offsets = [0, 64], sizes = [16, 8], strides = [1, 1]} : vector<16x96xf32> to vector<16x8xf32>
    %cst_79 = arith.constant dense<0.000000e+00> : vector<16x16xf32>
    %216 = tpu.matmul %213, %214, %cst_79 {dimension_numbers = #tpu.dot_dimension_numbers<[1], [1], [0], [0], [0, 0, 1, 0], [], []>} : vector<16x8xf32>, vector<16x8xf32>, vector<16x16xf32> -> vector<16x16xf32>
    %cst_80 = arith.constant 0.353553385 : f32
    %217 = vector.broadcast %cst_80 : f32 to vector<16x16xf32>
    %218 = arith.mulf %216, %217 : vector<16x16xf32>
    %219 = vector.broadcast %27 : vector<1x16xf32> to vector<16x16xf32>
    %220 = arith.addf %218, %219 : vector<16x16xf32>
    %cst_81 = arith.constant dense<0xFF800000> : vector<16xf32>
    %221 = vector.multi_reduction <maximumf>, %220, %cst_81 [1] : vector<16x16xf32> to vector<16xf32>
    %222 = vector.shape_cast %221 : vector<16xf32> to vector<16x1xf32>
    %223 = vector.broadcast %222 : vector<16x1xf32> to vector<16x16xf32>
    %224 = arith.subf %220, %223 : vector<16x16xf32>
    %225 = math.exp %224 : vector<16x16xf32>
    %cst_82 = arith.constant dense<0.000000e+00> : vector<16xf32>
    %226 = vector.multi_reduction <add>, %225, %cst_82 [1] : vector<16x16xf32> to vector<16xf32>
    %227 = vector.shape_cast %226 : vector<16xf32> to vector<16x1xf32>
    %228 = tpu.reciprocal %227 {approx = true} : vector<16x1xf32> -> vector<16x1xf32>
    %229 = vector.broadcast %228 : vector<16x1xf32> to vector<16x16xf32>
    %230 = arith.mulf %225, %229 : vector<16x16xf32>
    %cst_83 = arith.constant dense<0.000000e+00> : vector<16x8xf32>
    %231 = tpu.matmul %230, %215, %cst_83 {dimension_numbers = #tpu.dot_dimension_numbers<[1], [0], [0], [1], [0, 0, 1, 1], [], []>} : vector<16x16xf32>, vector<16x8xf32>, vector<16x8xf32> -> vector<16x8xf32>
    %c0_84 = arith.constant 0 : index
    %c0_85 = arith.constant 0 : index
    %232 = vector.load %arg12[%c0_84, %c0_85] : memref<16x32xf32, #tpu.memory_space<vmem>>, vector<16x8xf32>
    tpu.vector_store %arg12[%c0_84, %c0_85], %231 {strides = array<i32>} : memref<16x32xf32, #tpu.memory_space<vmem>>, vector<16x8xf32>,
    %233 = vector.extract_strided_slice %212 {offsets = [0, 8], sizes = [16, 8], strides = [1, 1]} : vector<16x96xf32> to vector<16x8xf32>
    %234 = vector.extract_strided_slice %212 {offsets = [0, 40], sizes = [16, 8], strides = [1, 1]} : vector<16x96xf32> to vector<16x8xf32>
    %235 = vector.extract_strided_slice %212 {offsets = [0, 72], sizes = [16, 8], strides = [1, 1]} : vector<16x96xf32> to vector<16x8xf32>
    %cst_86 = arith.constant dense<0.000000e+00> : vector<16x16xf32>
    %236 = tpu.matmul %233, %234, %cst_86 {dimension_numbers = #tpu.dot_dimension_numbers<[1], [1], [0], [0], [0, 0, 1, 0], [], []>} : vector<16x8xf32>, vector<16x8xf32>, vector<16x16xf32> -> vector<16x16xf32>
    %cst_87 = arith.constant 0.353553385 : f32
    %237 = vector.broadcast %cst_87 : f32 to vector<16x16xf32>
    %238 = arith.mulf %236, %237 : vector<16x16xf32>
    %239 = vector.broadcast %27 : vector<1x16xf32> to vector<16x16xf32>
    %240 = arith.addf %238, %239 : vector<16x16xf32>
    %cst_88 = arith.constant dense<0xFF800000> : vector<16xf32>
    %241 = vector.multi_reduction <maximumf>, %240, %cst_88 [1] : vector<16x16xf32> to vector<16xf32>
    %242 = vector.shape_cast %241 : vector<16xf32> to vector<16x1xf32>
    %243 = vector.broadcast %242 : vector<16x1xf32> to vector<16x16xf32>
    %244 = arith.subf %240, %243 : vector<16x16xf32>
    %245 = math.exp %244 : vector<16x16xf32>
    %cst_89 = arith.constant dense<0.000000e+00> : vector<16xf32>
    %246 = vector.multi_reduction <add>, %245, %cst_89 [1] : vector<16x16xf32> to vector<16xf32>
    %247 = vector.shape_cast %246 : vector<16xf32> to vector<16x1xf32>
    %248 = tpu.reciprocal %247 {approx = true} : vector<16x1xf32> -> vector<16x1xf32>
    %249 = vector.broadcast %248 : vector<16x1xf32> to vector<16x16xf32>
    %250 = arith.mulf %245, %249 : vector<16x16xf32>
    %cst_90 = arith.constant dense<0.000000e+00> : vector<16x8xf32>
    %251 = tpu.matmul %250, %235, %cst_90 {dimension_numbers = #tpu.dot_dimension_numbers<[1], [0], [0], [1], [0, 0, 1, 1], [], []>} : vector<16x16xf32>, vector<16x8xf32>, vector<16x8xf32> -> vector<16x8xf32>
    %c0_91 = arith.constant 0 : index
    %c8_92 = arith.constant 8 : index
    %252 = vector.load %arg12[%c0_91, %c8_92] : memref<16x32xf32, #tpu.memory_space<vmem>>, vector<16x8xf32>
    tpu.vector_store %arg12[%c0_91, %c8_92], %251 {strides = array<i32>} : memref<16x32xf32, #tpu.memory_space<vmem>>, vector<16x8xf32>,
    %253 = vector.extract_strided_slice %212 {offsets = [0, 16], sizes = [16, 8], strides = [1, 1]} : vector<16x96xf32> to vector<16x8xf32>
    %254 = vector.extract_strided_slice %212 {offsets = [0, 48], sizes = [16, 8], strides = [1, 1]} : vector<16x96xf32> to vector<16x8xf32>
    %255 = vector.extract_strided_slice %212 {offsets = [0, 80], sizes = [16, 8], strides = [1, 1]} : vector<16x96xf32> to vector<16x8xf32>
    %cst_93 = arith.constant dense<0.000000e+00> : vector<16x16xf32>
    %256 = tpu.matmul %253, %254, %cst_93 {dimension_numbers = #tpu.dot_dimension_numbers<[1], [1], [0], [0], [0, 0, 1, 0], [], []>} : vector<16x8xf32>, vector<16x8xf32>, vector<16x16xf32> -> vector<16x16xf32>
    %cst_94 = arith.constant 0.353553385 : f32
    %257 = vector.broadcast %cst_94 : f32 to vector<16x16xf32>
    %258 = arith.mulf %256, %257 : vector<16x16xf32>
    %259 = vector.broadcast %27 : vector<1x16xf32> to vector<16x16xf32>
    %260 = arith.addf %258, %259 : vector<16x16xf32>
    %cst_95 = arith.constant dense<0xFF800000> : vector<16xf32>
    %261 = vector.multi_reduction <maximumf>, %260, %cst_95 [1] : vector<16x16xf32> to vector<16xf32>
    %262 = vector.shape_cast %261 : vector<16xf32> to vector<16x1xf32>
    %263 = vector.broadcast %262 : vector<16x1xf32> to vector<16x16xf32>
    %264 = arith.subf %260, %263 : vector<16x16xf32>
    %265 = math.exp %264 : vector<16x16xf32>
    %cst_96 = arith.constant dense<0.000000e+00> : vector<16xf32>
    %266 = vector.multi_reduction <add>, %265, %cst_96 [1] : vector<16x16xf32> to vector<16xf32>
    %267 = vector.shape_cast %266 : vector<16xf32> to vector<16x1xf32>
    %268 = tpu.reciprocal %267 {approx = true} : vector<16x1xf32> -> vector<16x1xf32>
    %269 = vector.broadcast %268 : vector<16x1xf32> to vector<16x16xf32>
    %270 = arith.mulf %265, %269 : vector<16x16xf32>
    %cst_97 = arith.constant dense<0.000000e+00> : vector<16x8xf32>
    %271 = tpu.matmul %270, %255, %cst_97 {dimension_numbers = #tpu.dot_dimension_numbers<[1], [0], [0], [1], [0, 0, 1, 1], [], []>} : vector<16x16xf32>, vector<16x8xf32>, vector<16x8xf32> -> vector<16x8xf32>
    %c0_98 = arith.constant 0 : index
    %c16_99 = arith.constant 16 : index
    %272 = vector.load %arg12[%c0_98, %c16_99] : memref<16x32xf32, #tpu.memory_space<vmem>>, vector<16x8xf32>
    tpu.vector_store %arg12[%c0_98, %c16_99], %271 {strides = array<i32>} : memref<16x32xf32, #tpu.memory_space<vmem>>, vector<16x8xf32>,
    %273 = vector.extract_strided_slice %212 {offsets = [0, 24], sizes = [16, 8], strides = [1, 1]} : vector<16x96xf32> to vector<16x8xf32>
    %274 = vector.extract_strided_slice %212 {offsets = [0, 56], sizes = [16, 8], strides = [1, 1]} : vector<16x96xf32> to vector<16x8xf32>
    %275 = vector.extract_strided_slice %212 {offsets = [0, 88], sizes = [16, 8], strides = [1, 1]} : vector<16x96xf32> to vector<16x8xf32>
    %cst_100 = arith.constant dense<0.000000e+00> : vector<16x16xf32>
    %276 = tpu.matmul %273, %274, %cst_100 {dimension_numbers = #tpu.dot_dimension_numbers<[1], [1], [0], [0], [0, 0, 1, 0], [], []>} : vector<16x8xf32>, vector<16x8xf32>, vector<16x16xf32> -> vector<16x16xf32>
    %cst_101 = arith.constant 0.353553385 : f32
    %277 = vector.broadcast %cst_101 : f32 to vector<16x16xf32>
    %278 = arith.mulf %276, %277 : vector<16x16xf32>
    %279 = vector.broadcast %27 : vector<1x16xf32> to vector<16x16xf32>
    %280 = arith.addf %278, %279 : vector<16x16xf32>
    %cst_102 = arith.constant dense<0xFF800000> : vector<16xf32>
    %281 = vector.multi_reduction <maximumf>, %280, %cst_102 [1] : vector<16x16xf32> to vector<16xf32>
    %282 = vector.shape_cast %281 : vector<16xf32> to vector<16x1xf32>
    %283 = vector.broadcast %282 : vector<16x1xf32> to vector<16x16xf32>
    %284 = arith.subf %280, %283 : vector<16x16xf32>
    %285 = math.exp %284 : vector<16x16xf32>
    %cst_103 = arith.constant dense<0.000000e+00> : vector<16xf32>
    %286 = vector.multi_reduction <add>, %285, %cst_103 [1] : vector<16x16xf32> to vector<16xf32>
    %287 = vector.shape_cast %286 : vector<16xf32> to vector<16x1xf32>
    %288 = tpu.reciprocal %287 {approx = true} : vector<16x1xf32> -> vector<16x1xf32>
    %289 = vector.broadcast %288 : vector<16x1xf32> to vector<16x16xf32>
    %290 = arith.mulf %285, %289 : vector<16x16xf32>
    %cst_104 = arith.constant dense<0.000000e+00> : vector<16x8xf32>
    %291 = tpu.matmul %290, %275, %cst_104 {dimension_numbers = #tpu.dot_dimension_numbers<[1], [0], [0], [1], [0, 0, 1, 1], [], []>} : vector<16x16xf32>, vector<16x8xf32>, vector<16x8xf32> -> vector<16x8xf32>
    %c0_105 = arith.constant 0 : index
    %c24_106 = arith.constant 24 : index
    %292 = vector.load %arg12[%c0_105, %c24_106] : memref<16x32xf32, #tpu.memory_space<vmem>>, vector<16x8xf32>
    tpu.vector_store %arg12[%c0_105, %c24_106], %291 {strides = array<i32>} : memref<16x32xf32, #tpu.memory_space<vmem>>, vector<16x8xf32>,
    %c0_107 = arith.constant 0 : index
    %c0_108 = arith.constant 0 : index
    %293 = vector.load %arg12[%c0_107, %c0_108] : memref<16x32xf32, #tpu.memory_space<vmem>>, vector<16x32xf32>
    %c1_109 = arith.constant 1 : index
    %c0_110 = arith.constant 0 : index
    %c0_111 = arith.constant 0 : index
    %294 = vector.load %arg7[%c1_109, %c0_110, %c0_111] : memref<2x32x32xf32, #tpu.memory_space<vmem>>, vector<1x32x32xf32>
    %295 = vector.shape_cast %294 : vector<1x32x32xf32> to vector<32x32xf32>
    %cst_112 = arith.constant dense<0.000000e+00> : vector<16x32xf32>
    %296 = tpu.matmul %293, %295, %cst_112 {dimension_numbers = #tpu.dot_dimension_numbers<[1], [0], [0], [1], [0, 0, 1, 1], [], []>} : vector<16x32xf32>, vector<32x32xf32>, vector<16x32xf32> -> vector<16x32xf32>
    %297 = vector.broadcast %201 : vector<1x32xf32> to vector<16x32xf32>
    %298 = arith.addf %296, %297 : vector<16x32xf32>
    %299 = arith.addf %197, %298 : vector<16x32xf32>
    %cst_113 = arith.constant dense<0.000000e+00> : vector<16xf32>
    %300 = vector.multi_reduction <add>, %299, %cst_113 [1] : vector<16x32xf32> to vector<16xf32>
    %301 = vector.shape_cast %300 : vector<16xf32> to vector<16x1xf32>
    %cst_114 = arith.constant 3.200000e+01 : f32
    %302 = vector.broadcast %cst_114 : f32 to vector<16x1xf32>
    %303 = arith.divf %301, %302 : vector<16x1xf32>
    %304 = vector.broadcast %303 : vector<16x1xf32> to vector<16x32xf32>
    %305 = arith.subf %299, %304 : vector<16x32xf32>
    %306 = arith.mulf %305, %305 : vector<16x32xf32>
    %cst_115 = arith.constant dense<0.000000e+00> : vector<16xf32>
    %307 = vector.multi_reduction <add>, %306, %cst_115 [1] : vector<16x32xf32> to vector<16xf32>
    %308 = vector.shape_cast %307 : vector<16xf32> to vector<16x1xf32>
    %cst_116 = arith.constant 3.200000e+01 : f32
    %309 = vector.broadcast %cst_116 : f32 to vector<16x1xf32>
    %310 = arith.divf %308, %309 : vector<16x1xf32>
    %311 = vector.broadcast %303 : vector<16x1xf32> to vector<16x32xf32>
    %312 = arith.subf %299, %311 : vector<16x32xf32>
    %cst_117 = arith.constant 9.99999996E-13 : f32
    %313 = vector.broadcast %cst_117 : f32 to vector<16x1xf32>
    %314 = arith.addf %310, %313 : vector<16x1xf32>
    %315 = math.rsqrt %314 : vector<16x1xf32>
    %316 = vector.broadcast %315 : vector<16x1xf32> to vector<16x32xf32>
    %317 = arith.mulf %312, %316 : vector<16x32xf32>
    %318 = vector.broadcast %202 : vector<1x32xf32> to vector<16x32xf32>
    %319 = arith.mulf %317, %318 : vector<16x32xf32>
    %320 = vector.broadcast %203 : vector<1x32xf32> to vector<16x32xf32>
    %321 = arith.addf %319, %320 : vector<16x32xf32>
    %c1_118 = arith.constant 1 : index
    %c0_119 = arith.constant 0 : index
    %c0_120 = arith.constant 0 : index
    %322 = vector.load %arg8[%c1_118, %c0_119, %c0_120] : memref<2x32x64xf32, #tpu.memory_space<vmem>>, vector<1x32x64xf32>
    %323 = vector.shape_cast %322 : vector<1x32x64xf32> to vector<32x64xf32>
    %cst_121 = arith.constant dense<0.000000e+00> : vector<16x64xf32>
    %324 = tpu.matmul %321, %323, %cst_121 {dimension_numbers = #tpu.dot_dimension_numbers<[1], [0], [0], [1], [0, 0, 1, 1], [], []>} : vector<16x32xf32>, vector<32x64xf32>, vector<16x64xf32> -> vector<16x64xf32>
    %325 = vector.broadcast %204 : vector<1x64xf32> to vector<16x64xf32>
    %326 = arith.addf %324, %325 : vector<16x64xf32>
    %327 = arith.mulf %326, %326 : vector<16x64xf32>
    %328 = arith.mulf %326, %327 : vector<16x64xf32>
    %cst_122 = arith.constant 4.471500e-02 : f32
    %329 = vector.broadcast %cst_122 : f32 to vector<16x64xf32>
    %330 = arith.mulf %329, %328 : vector<16x64xf32>
    %331 = arith.addf %326, %330 : vector<16x64xf32>
    %cst_123 = arith.constant 0.797884583 : f32
    %332 = vector.broadcast %cst_123 : f32 to vector<16x64xf32>
    %333 = arith.mulf %332, %331 : vector<16x64xf32>
    %334 = math.tanh %333 : vector<16x64xf32>
    %cst_124 = arith.constant 1.000000e+00 : f32
    %335 = vector.broadcast %cst_124 : f32 to vector<16x64xf32>
    %336 = arith.addf %335, %334 : vector<16x64xf32>
    %cst_125 = arith.constant 5.000000e-01 : f32
    %337 = vector.broadcast %cst_125 : f32 to vector<16x64xf32>
    %338 = arith.mulf %337, %336 : vector<16x64xf32>
    %339 = arith.mulf %326, %338 : vector<16x64xf32>
    %c1_126 = arith.constant 1 : index
    %c0_127 = arith.constant 0 : index
    %c0_128 = arith.constant 0 : index
    %340 = vector.load %arg9[%c1_126, %c0_127, %c0_128] : memref<2x64x32xf32, #tpu.memory_space<vmem>>, vector<1x64x32xf32>
    %341 = vector.shape_cast %340 : vector<1x64x32xf32> to vector<64x32xf32>
    %cst_129 = arith.constant dense<0.000000e+00> : vector<16x32xf32>
    %342 = tpu.matmul %339, %341, %cst_129 {dimension_numbers = #tpu.dot_dimension_numbers<[1], [0], [0], [1], [0, 0, 1, 1], [], []>} : vector<16x64xf32>, vector<64x32xf32>, vector<16x32xf32> -> vector<16x32xf32>
    %343 = vector.broadcast %205 : vector<1x32xf32> to vector<16x32xf32>
    %344 = arith.addf %342, %343 : vector<16x32xf32>
    %345 = arith.addf %321, %344 : vector<16x32xf32>
    %cst_130 = arith.constant dense<0.000000e+00> : vector<16xf32>
    %346 = vector.multi_reduction <add>, %345, %cst_130 [1] : vector<16x32xf32> to vector<16xf32>
    %347 = vector.shape_cast %346 : vector<16xf32> to vector<16x1xf32>
    %cst_131 = arith.constant 3.200000e+01 : f32
    %348 = vector.broadcast %cst_131 : f32 to vector<16x1xf32>
    %349 = arith.divf %347, %348 : vector<16x1xf32>
    %350 = vector.broadcast %349 : vector<16x1xf32> to vector<16x32xf32>
    %351 = arith.subf %345, %350 : vector<16x32xf32>
    %352 = arith.mulf %351, %351 : vector<16x32xf32>
    %cst_132 = arith.constant dense<0.000000e+00> : vector<16xf32>
    %353 = vector.multi_reduction <add>, %352, %cst_132 [1] : vector<16x32xf32> to vector<16xf32>
    %354 = vector.shape_cast %353 : vector<16xf32> to vector<16x1xf32>
    %cst_133 = arith.constant 3.200000e+01 : f32
    %355 = vector.broadcast %cst_133 : f32 to vector<16x1xf32>
    %356 = arith.divf %354, %355 : vector<16x1xf32>
    %357 = vector.broadcast %349 : vector<16x1xf32> to vector<16x32xf32>
    %358 = arith.subf %345, %357 : vector<16x32xf32>
    %cst_134 = arith.constant 9.99999996E-13 : f32
    %359 = vector.broadcast %cst_134 : f32 to vector<16x1xf32>
    %360 = arith.addf %356, %359 : vector<16x1xf32>
    %361 = math.rsqrt %360 : vector<16x1xf32>
    %362 = vector.broadcast %361 : vector<16x1xf32> to vector<16x32xf32>
    %363 = arith.mulf %358, %362 : vector<16x32xf32>
    %364 = vector.broadcast %206 : vector<1x32xf32> to vector<16x32xf32>
    %365 = arith.mulf %363, %364 : vector<16x32xf32>
    %366 = vector.broadcast %207 : vector<1x32xf32> to vector<16x32xf32>
    %367 = arith.addf %365, %366 : vector<16x32xf32>
    %c0_135 = arith.constant 0 : index
    %c0_136 = arith.constant 0 : index
    %c0_137 = arith.constant 0 : index
    %368 = vector.load %arg3[%c0_135, %c0_136, %c0_137] : memref<1x4x16xf32, #tpu.memory_space<vmem>>, vector<1x4x16xf32>
    %369 = vector.shape_cast %368 : vector<1x4x16xf32> to vector<4x16xf32>
    %cst_138 = arith.constant dense<0.000000e+00> : vector<4x32xf32>
    %370 = tpu.matmul %369, %367, %cst_138 {dimension_numbers = #tpu.dot_dimension_numbers<[1], [0], [0], [1], [0, 0, 1, 1], [], []>} : vector<4x16xf32>, vector<16x32xf32>, vector<4x32xf32> -> vector<4x32xf32>
    %c2 = arith.constant 2 : index
    %c0_139 = arith.constant 0 : index
    %371 = vector.load %arg5[%c2, %c0_139] : memref<4x32xf32, #tpu.memory_space<vmem>>, vector<1x32xf32>
    %c3 = arith.constant 3 : index
    %c0_140 = arith.constant 0 : index
    %372 = vector.load %arg5[%c3, %c0_140] : memref<4x32xf32, #tpu.memory_space<vmem>>, vector<1x1xf32>
    %cst_141 = arith.constant dense<0.000000e+00> : vector<1x4xf32>
    %373 = tpu.matmul %371, %370, %cst_141 {dimension_numbers = #tpu.dot_dimension_numbers<[1], [1], [0], [0], [0, 0, 1, 0], [], []>} : vector<1x32xf32>, vector<4x32xf32>, vector<1x4xf32> -> vector<1x4xf32>
    %374 = vector.broadcast %372 : vector<1x1xf32> to vector<1x4xf32>
    %375 = arith.addf %373, %374 : vector<1x4xf32>
    %376 = arith.negf %375 : vector<1x4xf32>
    %377 = math.exp %376 : vector<1x4xf32>
    %cst_142 = arith.constant 1.000000e+00 : f32
    %378 = vector.broadcast %cst_142 : f32 to vector<1x4xf32>
    %379 = arith.addf %378, %377 : vector<1x4xf32>
    %380 = arith.divf %378, %379 : vector<1x4xf32>
    %c0_143 = arith.constant 0 : index
    %c0_144 = arith.constant 0 : index
    %c0_145 = arith.constant 0 : index
    %381 = vector.load %arg4[%c0_143, %c0_144, %c0_145] : memref<1x1x4xf32, #tpu.memory_space<vmem>>, vector<1x1x4xf32>
    %382 = vector.shape_cast %381 : vector<1x1x4xf32> to vector<1x4xf32>
    %383 = arith.mulf %380, %382 : vector<1x4xf32>
    %c0_146 = arith.constant 0 : index
    %c0_147 = arith.constant 0 : index
    %c0_148 = arith.constant 0 : index
    %384 = vector.load %arg11[%c0_146, %c0_147, %c0_148] : memref<1x1x4xf32, #tpu.memory_space<vmem>>, vector<1x1x4xf32>
    %385 = vector.shape_cast %384 : vector<1x1x4xf32> to vector<1x4xf32>
    %386 = vector.shape_cast %383 : vector<1x4xf32> to vector<1x1x4xf32>
    tpu.vector_store %arg11[%c0_146, %c0_147, %c0_148], %386 {strides = array<i32>} : memref<1x1x4xf32, #tpu.memory_space<vmem>>, vector<1x1x4xf32>,
    return
  }
  func.func @transform_0(%arg0: i32) -> (i32, i32, i32) {
    %c0_i32 = arith.constant 0 : i32
    %c0_i32_0 = arith.constant 0 : i32
    %c0_i32_1 = arith.constant 0 : i32
    return %arg0, %c0_i32, %c0_i32_0 : i32, i32, i32
  }
  func.func @transform_1(%arg0: i32) -> (i32, i32, i32) {
    %c0_i32 = arith.constant 0 : i32
    %c0_i32_0 = arith.constant 0 : i32
    %c0_i32_1 = arith.constant 0 : i32
    return %arg0, %c0_i32, %c0_i32_0 : i32, i32, i32
  }
  func.func @transform_2(%arg0: i32) -> (i32, i32, i32) {
    %c0_i32 = arith.constant 0 : i32
    %c0_i32_0 = arith.constant 0 : i32
    %c0_i32_1 = arith.constant 0 : i32
    return %arg0, %c0_i32, %c0_i32_0 : i32, i32, i32
  }
  func.func @transform_3(%arg0: i32) -> (i32, i32, i32) {
    %c0_i32 = arith.constant 0 : i32
    %c0_i32_0 = arith.constant 0 : i32
    %c0_i32_1 = arith.constant 0 : i32
    return %arg0, %c0_i32, %c0_i32_0 : i32, i32, i32
  }
  func.func @transform_4(%arg0: i32) -> (i32, i32) {
    %c0_i32 = arith.constant 0 : i32
    %c0_i32_0 = arith.constant 0 : i32
    %c0_i32_1 = arith.constant 0 : i32
    return %c0_i32, %c0_i32_0 : i32, i32
  }
  func.func @transform_5(%arg0: i32) -> (i32, i32, i32) {
    %c0_i32 = arith.constant 0 : i32
    %c0_i32_0 = arith.constant 0 : i32
    %c0_i32_1 = arith.constant 0 : i32
    %c0_i32_2 = arith.constant 0 : i32
    return %c0_i32, %c0_i32_0, %c0_i32_1 : i32, i32, i32
  }
  func.func @transform_6(%arg0: i32) -> (i32, i32, i32) {
    %c0_i32 = arith.constant 0 : i32
    %c0_i32_0 = arith.constant 0 : i32
    %c0_i32_1 = arith.constant 0 : i32
    %c0_i32_2 = arith.constant 0 : i32
    return %c0_i32, %c0_i32_0, %c0_i32_1 : i32, i32, i32
  }
  func.func @transform_7(%arg0: i32) -> (i32, i32, i32) {
    %c0_i32 = arith.constant 0 : i32
    %c0_i32_0 = arith.constant 0 : i32
    %c0_i32_1 = arith.constant 0 : i32
    %c0_i32_2 = arith.constant 0 : i32
    return %c0_i32, %c0_i32_0, %c0_i32_1 : i32, i32, i32
  }
  func.func @transform_8(%arg0: i32) -> (i32, i32, i32) {
    %c0_i32 = arith.constant 0 : i32
    %c0_i32_0 = arith.constant 0 : i32
    %c0_i32_1 = arith.constant 0 : i32
    %c0_i32_2 = arith.constant 0 : i32
    return %c0_i32, %c0_i32_0, %c0_i32_1 : i32, i32, i32
  }
  func.func @transform_9(%arg0: i32) -> (i32, i32, i32) {
    %c0_i32 = arith.constant 0 : i32
    %c0_i32_0 = arith.constant 0 : i32
    %c0_i32_1 = arith.constant 0 : i32
    %c0_i32_2 = arith.constant 0 : i32
    return %c0_i32, %c0_i32_0, %c0_i32_1 : i32, i32, i32
  }
  func.func @transform_10(%arg0: i32) -> (i32, i32, i32) {
    %c0_i32 = arith.constant 0 : i32
    %c0_i32_0 = arith.constant 0 : i32
    %c0_i32_1 = arith.constant 0 : i32
    return %arg0, %c0_i32, %c0_i32_0 : i32, i32, i32
  }
}

</mosaic_0001>

<llo_original>
// kernel: bert_summarizer_forward.1
$region0: #{bert_summarizer_forward.1}
  #allocation0 [shape = 'u32[]', space=smem, size = 0x4, offset = 0x4, fixed_abs, tag = 'smem constant byte address 0x4 - core index']
  #allocation1 [shape = 'u32[72,128]{1,0:T(1,128)}', space=vmem, size = 0x9000, scoped, tag = 'internal scratch']
  #allocation2 [shape = 'f32[16,32]{1,0:T(8,128)}', space=vmem, size = 0x2000, scoped, tag = 'scratch operand']
  %s0 = inlined_call_operand.vmem [shape: f32[2,16,32], index: 0, kind: input, shape index: {}]
  %s1 = inlined_call_operand.vmem [shape: f32[2,1,16], index: 1, kind: input, shape index: {}]
  %s2 = inlined_call_operand.vmem [shape: f32[2,4,16], index: 2, kind: input, shape index: {}]
  %s3 = inlined_call_operand.vmem [shape: f32[2,1,4], index: 3, kind: input, shape index: {}]
  %s4 = inlined_call_operand.vmem [shape: f32[4,32], index: 4, kind: input, shape index: {}]
  %s5 = inlined_call_operand.vmem [shape: f32[2,32,96], index: 5, kind: input, shape index: {}]
  %s6 = inlined_call_operand.vmem [shape: f32[2,32,32], index: 6, kind: input, shape index: {}]
  %s7 = inlined_call_operand.vmem [shape: f32[2,32,64], index: 7, kind: input, shape index: {}]
  %s8 = inlined_call_operand.vmem [shape: f32[2,64,32], index: 8, kind: input, shape index: {}]
  %s9 = inlined_call_operand.vmem [shape: f32[2,8,128], index: 9, kind: input, shape index: {}]
  %s10 = inlined_call_operand.hbm [shape: f32[2,1,4], index: 10, kind: output, shape index: {}]
  %s11 = sld [smem:[#allocation0]]
  $region73: #{bert_summarizer_forward.1} parent=0
    _
  %s13 = ssub.s32 1, %s11
  %s14 = scalar_select 0, %s13, %s11
  $region1: #{bert_summarizer_forward.1} parent=0
    #allocation3 [shape = 'u8[1024]{0}', space=vmem, size = 0x400, scoped, tag = 'output window, operand 0']
    #allocation4 [shape = 's32[2]{0}', space=sflag, size = 0x8, scoped, tag = 'scoped memory for bert_summarizer_forward.1']
    %15 = vsyncpa [#allocation4], 0
    %s16 = scalar_lea.sflag [#allocation4], 1
    %17 = vsyncpa %s16, 0
    loop: start=0, step=1, limit=4
    $region2: #{bert_summarizer_forward.1} parent=1 // loop_pre_header
      _
    $region3: #{bert_summarizer_forward.1} parent=1 // loop_header
      %s19 = sphi 0, %s23
      %p20 = scmp.ge.s32.totalorder %s19, 4
      %s29 = sphi 0, %s31
      %s32 = sphi 0, %s29
      %s33 = sphi 0, %s32
      %s49 = sphi 0, %s33
      %s55 = sphi 0, %s57
      %s58 = sphi 0, %s55
      %s59 = sphi 0, %s58
      %s75 = sphi 0, %s59
      %s81 = sphi 0, %s83
      %s84 = sphi 0, %s81
      %s85 = sphi 0, %s84
      %s101 = sphi 0, %s85
      %s107 = sphi 0, %s109
      %s110 = sphi 0, %s107
      %s111 = sphi 0, %s110
      %s127 = sphi 0, %s111
      %s131 = sphi 0, %s131
      %s133 = sphi 0, %s131
      %s134 = sphi 0, %s133
      %s148 = sphi 0, %s134
      %s152 = sphi 0, %s152
      %s154 = sphi 0, %s152
      %s155 = sphi 0, %s154
      %s169 = sphi 0, %s155
      %s173 = sphi 0, %s173
      %s175 = sphi 0, %s173
      %s176 = sphi 0, %s175
      %s190 = sphi 0, %s176
      %s194 = sphi 0, %s194
      %s196 = sphi 0, %s194
      %s197 = sphi 0, %s196
      %s211 = sphi 0, %s197
      %s215 = sphi 0, %s215
      %s217 = sphi 0, %s215
      %s218 = sphi 0, %s217
      %s232 = sphi 0, %s218
      %s236 = sphi 0, %s236
      %s238 = sphi 0, %s236
      %s239 = sphi 0, %s238
      %s253 = sphi 0, %s239
      %s259 = sphi 0, %s261
      %s262 = sphi 0, %s259
      %s263 = sphi 0, %s262
      %s279 = sphi 0, %s263
    $region4: #{bert_summarizer_forward.1} parent=1 // loop_header_branch
      %22 = sbr.rel (%p20) target = $region8
    $region5: #{bert_summarizer_forward.1} parent=1 // loop_body
      %s24 = ssub.s32 %s19, 1
      %s25 = ssub.s32 %s19, 2
      %s26 = sadd.s32 %s19, 1
      %s27 = ssub.s32 %s19, %s26
      %p28 = scmp.eq.s32.totalorder %s27, 0
      %s30 = sadd.s32 %s29, 1
      %s31 = scalar_select %p28, %s29, %s30
      %p34 = pneg %p28
      %p35 = scmp.eq.s32.totalorder %s19, 1
      %p36 = por %p34, %p35
      %p37 = scmp.ne.s32.totalorder %s29, %s32
      %p38 = scmp.eq.s32.totalorder %s19, 0
      %p39 = por %p37, %p38
      %p40 = scmp.ne.s32.totalorder %s29, %s32
      %p41 = scmp.eq.s32.totalorder %s24, 1
      %p42 = por %p40, %p41
      %p43 = scmp.ne.s32.totalorder %s32, %s33
      %p44 = scmp.eq.s32.totalorder %s24, 0
      %p45 = por %p43, %p44
      %p46 = scmp.ne.s32.totalorder %s32, %s33
      %p47 = scmp.eq.s32.totalorder %s25, 1
      %p48 = por %p46, %p47
      %p50 = scmp.ne.s32.totalorder %s33, %s49
      %p51 = scmp.eq.s32.totalorder %s25, 0
      %p52 = por %p50, %p51
      %s53 = ssub.s32 %s19, %s26
      %p54 = scmp.eq.s32.totalorder %s53, 0
      %s56 = sadd.s32 %s55, 1
      %s57 = scalar_select %p54, %s55, %s56
      %p60 = pneg %p54
      %p61 = scmp.eq.s32.totalorder %s19, 1
      %p62 = por %p60, %p61
      %p63 = scmp.ne.s32.totalorder %s55, %s58
      %p64 = scmp.eq.s32.totalorder %s19, 0
      %p65 = por %p63, %p64
      %p66 = scmp.ne.s32.totalorder %s55, %s58
      %p67 = scmp.eq.s32.totalorder %s24, 1
      %p68 = por %p66, %p67
      %p69 = scmp.ne.s32.totalorder %s58, %s59
      %p70 = scmp.eq.s32.totalorder %s24, 0
      %p71 = por %p69, %p70
      %p72 = scmp.ne.s32.totalorder %s58, %s59
      %p73 = scmp.eq.s32.totalorder %s25, 1
      %p74 = por %p72, %p73
      %p76 = scmp.ne.s32.totalorder %s59, %s75
      %p77 = scmp.eq.s32.totalorder %s25, 0
      %p78 = por %p76, %p77
      %s79 = ssub.s32 %s19, %s26
      %p80 = scmp.eq.s32.totalorder %s79, 0
      %s82 = sadd.s32 %s81, 1
      %s83 = scalar_select %p80, %s81, %s82
      %p86 = pneg %p80
      %p87 = scmp.eq.s32.totalorder %s19, 1
      %p88 = por %p86, %p87
      %p89 = scmp.ne.s32.totalorder %s81, %s84
      %p90 = scmp.eq.s32.totalorder %s19, 0
      %p91 = por %p89, %p90
      %p92 = scmp.ne.s32.totalorder %s81, %s84
      %p93 = scmp.eq.s32.totalorder %s24, 1
      %p94 = por %p92, %p93
      %p95 = scmp.ne.s32.totalorder %s84, %s85
      %p96 = scmp.eq.s32.totalorder %s24, 0
      %p97 = por %p95, %p96
      %p98 = scmp.ne.s32.totalorder %s84, %s85
      %p99 = scmp.eq.s32.totalorder %s25, 1
      %p100 = por %p98, %p99
      %p102 = scmp.ne.s32.totalorder %s85, %s101
      %p103 = scmp.eq.s32.totalorder %s25, 0
      %p104 = por %p102, %p103
      %s105 = ssub.s32 %s19, %s26
      %p106 = scmp.eq.s32.totalorder %s105, 0
      %s108 = sadd.s32 %s107, 1
      %s109 = scalar_select %p106, %s107, %s108
      %p112 = pneg %p106
      %p113 = scmp.eq.s32.totalorder %s19, 1
      %p114 = por %p112, %p113
      %p115 = scmp.ne.s32.totalorder %s107, %s110
      %p116 = scmp.eq.s32.totalorder %s19, 0
      %p117 = por %p115, %p116
      %p118 = scmp.ne.s32.totalorder %s107, %s110
      %p119 = scmp.eq.s32.totalorder %s24, 1
      %p120 = por %p118, %p119
      %p121 = scmp.ne.s32.totalorder %s110, %s111
      %p122 = scmp.eq.s32.totalorder %s24, 0
      %p123 = por %p121, %p122
      %p124 = scmp.ne.s32.totalorder %s110, %s111
      %p125 = scmp.eq.s32.totalorder %s25, 1
      %p126 = por %p124, %p125
      %p128 = scmp.ne.s32.totalorder %s111, %s127
      %p129 = scmp.eq.s32.totalorder %s25, 0
      %p130 = por %p128, %p129
      %s132 = sadd.s32 %s131, 1
      %p135 = scmp.eq.s32.totalorder %s19, 1
      %p136 = scmp.ne.s32.totalorder %s131, %s133
      %p137 = scmp.eq.s32.totalorder %s19, 0
      %p138 = por %p136, %p137
      %p139 = scmp.ne.s32.totalorder %s131, %s133
      %p140 = scmp.eq.s32.totalorder %s24, 1
      %p141 = por %p139, %p140
      %p142 = scmp.ne.s32.totalorder %s133, %s134
      %p143 = scmp.eq.s32.totalorder %s24, 0
      %p144 = por %p142, %p143
      %p145 = scmp.ne.s32.totalorder %s133, %s134
      %p146 = scmp.eq.s32.totalorder %s25, 1
      %p147 = por %p145, %p146
      %p149 = scmp.ne.s32.totalorder %s134, %s148
      %p150 = scmp.eq.s32.totalorder %s25, 0
      %p151 = por %p149, %p150
      %s153 = sadd.s32 %s152, 1
      %p156 = scmp.eq.s32.totalorder %s19, 1
      %p157 = scmp.ne.s32.totalorder %s152, %s154
      %p158 = scmp.eq.s32.totalorder %s19, 0
      %p159 = por %p157, %p158
      %p160 = scmp.ne.s32.totalorder %s152, %s154
      %p161 = scmp.eq.s32.totalorder %s24, 1
      %p162 = por %p160, %p161
      %p163 = scmp.ne.s32.totalorder %s154, %s155
      %p164 = scmp.eq.s32.totalorder %s24, 0
      %p165 = por %p163, %p164
      %p166 = scmp.ne.s32.totalorder %s154, %s155
      %p167 = scmp.eq.s32.totalorder %s25, 1
      %p168 = por %p166, %p167
      %p170 = scmp.ne.s32.totalorder %s155, %s169
      %p171 = scmp.eq.s32.totalorder %s25, 0
      %p172 = por %p170, %p171
      %s174 = sadd.s32 %s173, 1
      %p177 = scmp.eq.s32.totalorder %s19, 1
      %p178 = scmp.ne.s32.totalorder %s173, %s175
      %p179 = scmp.eq.s32.totalorder %s19, 0
      %p180 = por %p178, %p179
      %p181 = scmp.ne.s32.totalorder %s173, %s175
      %p182 = scmp.eq.s32.totalorder %s24, 1
      %p183 = por %p181, %p182
      %p184 = scmp.ne.s32.totalorder %s175, %s176
      %p185 = scmp.eq.s32.totalorder %s24, 0
      %p186 = por %p184, %p185
      %p187 = scmp.ne.s32.totalorder %s175, %s176
      %p188 = scmp.eq.s32.totalorder %s25, 1
      %p189 = por %p187, %p188
      %p191 = scmp.ne.s32.totalorder %s176, %s190
      %p192 = scmp.eq.s32.totalorder %s25, 0
      %p193 = por %p191, %p192
      %s195 = sadd.s32 %s194, 1
      %p198 = scmp.eq.s32.totalorder %s19, 1
      %p199 = scmp.ne.s32.totalorder %s194, %s196
      %p200 = scmp.eq.s32.totalorder %s19, 0
      %p201 = por %p199, %p200
      %p202 = scmp.ne.s32.totalorder %s194, %s196
      %p203 = scmp.eq.s32.totalorder %s24, 1
      %p204 = por %p202, %p203
      %p205 = scmp.ne.s32.totalorder %s196, %s197
      %p206 = scmp.eq.s32.totalorder %s24, 0
      %p207 = por %p205, %p206
      %p208 = scmp.ne.s32.totalorder %s196, %s197
      %p209 = scmp.eq.s32.totalorder %s25, 1
      %p210 = por %p208, %p209
      %p212 = scmp.ne.s32.totalorder %s197, %s211
      %p213 = scmp.eq.s32.totalorder %s25, 0
      %p214 = por %p212, %p213
      %s216 = sadd.s32 %s215, 1
      %p219 = scmp.eq.s32.totalorder %s19, 1
      %p220 = scmp.ne.s32.totalorder %s215, %s217
      %p221 = scmp.eq.s32.totalorder %s19, 0
      %p222 = por %p220, %p221
      %p223 = scmp.ne.s32.totalorder %s215, %s217
      %p224 = scmp.eq.s32.totalorder %s24, 1
      %p225 = por %p223, %p224
      %p226 = scmp.ne.s32.totalorder %s217, %s218
      %p227 = scmp.eq.s32.totalorder %s24, 0
      %p228 = por %p226, %p227
      %p229 = scmp.ne.s32.totalorder %s217, %s218
      %p230 = scmp.eq.s32.totalorder %s25, 1
      %p231 = por %p229, %p230
      %p233 = scmp.ne.s32.totalorder %s218, %s232
      %p234 = scmp.eq.s32.totalorder %s25, 0
      %p235 = por %p233, %p234
      %s237 = sadd.s32 %s236, 1
      %p240 = scmp.eq.s32.totalorder %s19, 1
      %p241 = scmp.ne.s32.totalorder %s236, %s238
      %p242 = scmp.eq.s32.totalorder %s19, 0
      %p243 = por %p241, %p242
      %p244 = scmp.ne.s32.totalorder %s236, %s238
      %p245 = scmp.eq.s32.totalorder %s24, 1
      %p246 = por %p244, %p245
      %p247 = scmp.ne.s32.totalorder %s238, %s239
      %p248 = scmp.eq.s32.totalorder %s24, 0
      %p249 = por %p247, %p248
      %p250 = scmp.ne.s32.totalorder %s238, %s239
      %p251 = scmp.eq.s32.totalorder %s25, 1
      %p252 = por %p250, %p251
      %p254 = scmp.ne.s32.totalorder %s239, %s253
      %p255 = scmp.eq.s32.totalorder %s25, 0
      %p256 = por %p254, %p255
      %s257 = ssub.s32 %s19, %s26
      %p258 = scmp.eq.s32.totalorder %s257, 0
      %s260 = sadd.s32 %s259, 1
      %s261 = scalar_select %p258, %s259, %s260
      %p264 = pneg %p258
      %p265 = scmp.eq.s32.totalorder %s19, 1
      %p266 = por %p264, %p265
      %p267 = scmp.ne.s32.totalorder %s259, %s262
      %p268 = scmp.eq.s32.totalorder %s19, 0
      %p269 = por %p267, %p268
      %p270 = scmp.ne.s32.totalorder %s259, %s262
      %p271 = scmp.eq.s32.totalorder %s24, 1
      %p272 = por %p270, %p271
      %p273 = scmp.ne.s32.totalorder %s262, %s263
      %p274 = scmp.eq.s32.totalorder %s24, 0
      %p275 = por %p273, %p274
      %p276 = scmp.ne.s32.totalorder %s262, %s263
      %p277 = scmp.eq.s32.totalorder %s25, 1
      %p278 = por %p276, %p277
      %p280 = scmp.ne.s32.totalorder %s263, %s279
      %p281 = scmp.eq.s32.totalorder %s25, 0
      %p282 = por %p280, %p281
      %p283 = scmp.le.s32.totalorder 1, %s19
      %p284 = scmp.lt.s32.totalorder %s19, 3
      %p285 = pnand %p283, %p284
      %p286 = pneg %p285
      // Predicated region
      $region9: #{bert_summarizer_forward.1} parent=5 // pred_check
        _
      $region10: #{bert_summarizer_forward.1} parent=5 // pred_check_branch
        %288 = sbr.rel (%p285) target = $region12
      $region11: #{bert_summarizer_forward.1} parent=5 // pred_region
        %s289 = ssub.s32 %s19, 1
        // Predicated region
        $region13: #{bert_summarizer_forward.1} parent=11 // pred_check
          %p290 = pneg %p144
        $region14: #{bert_summarizer_forward.1} parent=11 // pred_check_branch
          %292 = sbr.rel (%p290) target = $region16
        $region15: #{bert_summarizer_forward.1} parent=11 // pred_region
          _
        $region16: #{bert_summarizer_forward.1} parent=11 // pred_fallthru
          _
        // Predicated region
        $region17: #{bert_summarizer_forward.1} parent=11 // pred_check
          %p293 = pneg %p165
        $region18: #{bert_summarizer_forward.1} parent=11 // pred_check_branch
          %295 = sbr.rel (%p293) target = $region20
        $region19: #{bert_summarizer_forward.1} parent=11 // pred_region
          _
        $region20: #{bert_summarizer_forward.1} parent=11 // pred_fallthru
          _
        // Predicated region
        $region21: #{bert_summarizer_forward.1} parent=11 // pred_check
          %p296 = pneg %p186
        $region22: #{bert_summarizer_forward.1} parent=11 // pred_check_branch
          %298 = sbr.rel (%p296) target = $region24
        $region23: #{bert_summarizer_forward.1} parent=11 // pred_region
          _
        $region24: #{bert_summarizer_forward.1} parent=11 // pred_fallthru
          _
        // Predicated region
        $region25: #{bert_summarizer_forward.1} parent=11 // pred_check
          %p299 = pneg %p207
        $region26: #{bert_summarizer_forward.1} parent=11 // pred_check_branch
          %301 = sbr.rel (%p299) target = $region28
        $region27: #{bert_summarizer_forward.1} parent=11 // pred_region
          _
        $region28: #{bert_summarizer_forward.1} parent=11 // pred_fallthru
          _
        // Predicated region
        $region29: #{bert_summarizer_forward.1} parent=11 // pred_check
          %p302 = pneg %p228
        $region30: #{bert_summarizer_forward.1} parent=11 // pred_check_branch
          %304 = sbr.rel (%p302) target = $region32
        $region31: #{bert_summarizer_forward.1} parent=11 // pred_region
          _
        $region32: #{bert_summarizer_forward.1} parent=11 // pred_fallthru
          _
        // Predicated region
        $region33: #{bert_summarizer_forward.1} parent=11 // pred_check
          %p305 = pneg %p249
        $region34: #{bert_summarizer_forward.1} parent=11 // pred_check_branch
          %307 = sbr.rel (%p305) target = $region36
        $region35: #{bert_summarizer_forward.1} parent=11 // pred_region
          _
        $region36: #{bert_summarizer_forward.1} parent=11 // pred_fallthru
          _
      $region12: #{bert_summarizer_forward.1} parent=5 // pred_fallthru
        _
      %p308 = scmp.lt.s32.totalorder %s19, 2
      // Predicated region
      $region37: #{bert_summarizer_forward.1} parent=5 // pred_check
        %p309 = pneg %p308
      $region38: #{bert_summarizer_forward.1} parent=5 // pred_check_branch
        %311 = sbr.rel (%p309) target = $region40
      $region39: #{bert_summarizer_forward.1} parent=5 // pred_region
        // Predicated region
        $region41: #{bert_summarizer_forward.1} parent=39 // pred_check
          %p312 = pneg %p39
        $region42: #{bert_summarizer_forward.1} parent=39 // pred_check_branch
          %314 = sbr.rel (%p312) target = $region44
        $region43: #{bert_summarizer_forward.1} parent=39 // pred_region
          %p315 = scmp.lt.s32.totalorder %s19, 1
          %s316 = scalar_select %p315, %s19, 1
          %s317 = smul.addr %s316, 2
          %s318 = smul.addr %s317, 8
          %s319 = scalar_lea.vmem %s0, %s318
        $region44: #{bert_summarizer_forward.1} parent=39 // pred_fallthru
          _
        // Predicated region
        $region45: #{bert_summarizer_forward.1} parent=39 // pred_check
          %p320 = pneg %p65
        $region46: #{bert_summarizer_forward.1} parent=39 // pred_check_branch
          %322 = sbr.rel (%p320) target = $region48
        $region47: #{bert_summarizer_forward.1} parent=39 // pred_region
          %p323 = scmp.lt.s32.totalorder %s19, 1
          %s324 = scalar_select %p323, %s19, 1
          %s325 = scalar_lea.vmem %s1, %s324
        $region48: #{bert_summarizer_forward.1} parent=39 // pred_fallthru
          _
        // Predicated region
        $region49: #{bert_summarizer_forward.1} parent=39 // pred_check
          %p326 = pneg %p91
        $region50: #{bert_summarizer_forward.1} parent=39 // pred_check_branch
          %328 = sbr.rel (%p326) target = $region52
        $region51: #{bert_summarizer_forward.1} parent=39 // pred_region
          %p329 = scmp.lt.s32.totalorder %s19, 1
          %s330 = scalar_select %p329, %s19, 1
          %s331 = smul.addr %s330, 4
          %s332 = scalar_lea.vmem %s2, %s331
        $region52: #{bert_summarizer_forward.1} parent=39 // pred_fallthru
          _
        // Predicated region
        $region53: #{bert_summarizer_forward.1} parent=39 // pred_check
          %p333 = pneg %p117
        $region54: #{bert_summarizer_forward.1} parent=39 // pred_check_branch
          %335 = sbr.rel (%p333) target = $region56
        $region55: #{bert_summarizer_forward.1} parent=39 // pred_region
          %p336 = scmp.lt.s32.totalorder %s19, 1
          %s337 = scalar_select %p336, %s19, 1
          %s338 = scalar_lea.vmem %s3, %s337
        $region56: #{bert_summarizer_forward.1} parent=39 // pred_fallthru
          _
      $region40: #{bert_summarizer_forward.1} parent=5 // pred_fallthru
        _
      %p339 = scmp.le.s32.totalorder 1, %s19
      %p340 = scmp.lt.s32.totalorder %s19, 3
      %p341 = pnand %p339, %p340
      %p342 = pneg %p341
      // Predicated region
      $region57: #{bert_summarizer_forward.1} parent=5 // pred_check
        _
      $region58: #{bert_summarizer_forward.1} parent=5 // pred_check_branch
        %344 = sbr.rel (%p341) target = $region60
      $region59: #{bert_summarizer_forward.1} parent=5 // pred_region
        %s345 = ssub.s32 %s19, 1
        %p346 = scmp.lt.s32.totalorder %s24, 1
        %s347 = scalar_select %p346, %s24, 1
        %s348 = smul.addr %s347, 2
        %s349 = smul.addr %s348, 8
        %s350 = scalar_lea.vmem %s0, %s349
        %p351 = pneg %p45
        %p352 = pneg %p42
        %p353 = scmp.lt.s32.totalorder %s24, 1
        %s354 = scalar_select %p353, %s24, 1
        %s355 = scalar_lea.vmem %s1, %s354
        %p356 = pneg %p71
        %p357 = pneg %p68
        %p358 = scmp.lt.s32.totalorder %s24, 1
        %s359 = scalar_select %p358, %s24, 1
        %s360 = smul.addr %s359, 4
        %s361 = scalar_lea.vmem %s2, %s360
        %p362 = pneg %p97
        %p363 = pneg %p94
        %p364 = scmp.lt.s32.totalorder %s24, 1
        %s365 = scalar_select %p364, %s24, 1
        %s366 = scalar_lea.vmem %s3, %s365
        %p367 = pneg %p123
        %p368 = pneg %p120
        %p369 = pneg %p144
        %p370 = pneg %p141
        %p371 = pneg %p165
        %p372 = pneg %p162
        %p373 = pneg %p186
        %p374 = pneg %p183
        %p375 = pneg %p207
        %p376 = pneg %p204
        %p377 = pneg %p228
        %p378 = pneg %p225
        %p379 = pneg %p249
        %p380 = pneg %p246
        %p381 = pneg %p275
        %p382 = pneg %p272
        %s383 = sand.u32 %s262, 1
        %s384 = scalar_lea.sflag [#allocation4], %s383
        %s385 = sand.u32 %s262, 1
        %s386 = scalar_lea.vmem [#allocation3], %s385
        %p387 = scmp.lt.s32.totalorder %s24, 1
        %s388 = scalar_select %p387, %s24, 1
        %s389 = smul.addr %s388, 2
        %s390 = smul.addr %s389, 8
        %s391 = scalar_lea.vmem %s0, %s390
        %p392 = scmp.lt.s32.totalorder %s24, 1
        %s393 = scalar_select %p392, %s24, 1
        %s394 = scalar_lea.vmem %s1, %s393
        %p395 = scmp.lt.s32.totalorder %s24, 1
        %s396 = scalar_select %p395, %s24, 1
        %s397 = smul.addr %s396, 4
        %s398 = scalar_lea.vmem %s2, %s397
        %p399 = scmp.lt.s32.totalorder %s24, 1
        %s400 = scalar_select %p399, %s24, 1
        %s401 = scalar_lea.vmem %s3, %s400
        %v402 = vld [vmem:[%s391] sm:$0xff]
        %v403 = vld [vmem:[%s391 + $0x8] sm:$0xff]
        %v404 = vld [vmem:[%s4] sm:$0x1]
        %v405 = vld [vmem:[%s4 + $0x1] sm:$0x1]
        %vm406 = vcmask 261120
        %v407 = vsel %vm406, %v402, 0.0
        %408 = vadd.xlane.f32.xlu0 %v407
        %v409 = vpop.xlane.xlu0 %408
        %v410 = vsel %vm406, %v403, 0.0
        %411 = vadd.xlane.f32.xlu0 %v410
        %v412 = vpop.xlane.xlu0 %411
        %v413 = vrcp.pop 32.0
        %v414 = vmul.f32 32.0, %v413
        %v415 = vsub.f32 1.0, %v414
        %v416 = vmul.f32 %v413, %v415
        %v417 = vadd.f32 %v413, %v416
        %vm418 = vweird.f32 %v413
        %v419 = vsel %vm418, %v413, %v417
        %v420 = vmul.f32 %v409, %v419
        %v421 = vmul.f32 %v412, %v419
        %v422 = vsub.f32 %v402, %v420
        %v423 = vsub.f32 %v403, %v421
        %v424 = vmul.f32 %v422, %v422
        %v425 = vmul.f32 %v423, %v423
        %v426 = vsel %vm406, %v424, 0.0
        %427 = vadd.xlane.f32.xlu0 %v426
        %v428 = vpop.xlane.xlu0 %427
        %v429 = vsel %vm406, %v425, 0.0
        %430 = vadd.xlane.f32.xlu0 %v429
        %v431 = vpop.xlane.xlu0 %430
        %v432 = vmul.f32 %v428, %v419
        %v433 = vmul.f32 %v431, %v419
        %v434 = vadd.f32 %v432, 1e-12
        %v435 = vadd.f32 %v433, 1e-12
        %v436 = vrsqrt.pop %v434
        %v437 = vmul.f32 %v436, %v434
        %v438 = vmul.f32 %v437, %v436
        %v439 = vmul.f32 0.5, %v438
        %v440 = vsub.f32 1.5, %v439
        %v441 = vmul.f32 %v436, %v440
        %vm442 = vweird.f32 %v434
        %vm443 = vweird.f32 %v436
        %vm444 = vmor %vm442, %vm443
        %v445 = vsel %vm444, %v436, %v441
        %v446 = vrsqrt.pop %v435
        %v447 = vmul.f32 %v446, %v435
        %v448 = vmul.f32 %v447, %v446
        %v449 = vmul.f32 0.5, %v448
        %v450 = vsub.f32 1.5, %v449
        %v451 = vmul.f32 %v446, %v450
        %vm452 = vweird.f32 %v435
        %vm453 = vweird.f32 %v446
        %vm454 = vmor %vm452, %vm453
        %v455 = vsel %vm454, %v446, %v451
        %v456 = vmul.f32 %v422, %v445
        %v457 = vmul.f32 %v423, %v455
        %v458 = vperm.slane %v404, 0
        %v459 = vmul.f32 %v456, %v458
        %v460 = vmul.f32 %v457, %v458
        %v461 = vperm.slane %v405, 0
        %v462 = vadd.f32 %v459, %v461
        %v463 = vadd.f32 %v460, %v461
        %v464 = vld [vmem:[%s394] sm:$0x1]
        %v465 = vld [vmem:[%s9] sm:$0xff]
        %v466 = vld [vmem:[%s5] sm:$0xff]
        %v467 = vld [vmem:[%s5 + $0x8] sm:$0xff]
        %v468 = vld [vmem:[%s5 + $0x10] sm:$0xff]
        %v469 = vld [vmem:[%s5 + $0x18] sm:$0xff]
        %v470 = vperm.slane %v465, 0
        %v472 = vsel %vm406, %v462, 0
        %v475 = vsel %vm406, %v463, 0
        %477 = vmatpush.msra.mxu0 0.0
        %478 = vmatpush.msra.mxu0 0.0
        %479 = vmatpush.msra.mxu0 0.0
        %480 = vmatpush.msra.mxu0 0.0
        %481 = vmatpush.msra.mxu0 0.0
        %482 = vmatpush.msra.mxu0 0.0
        %483 = vmatpush.msra.mxu0 0.0
        %484 = vmatpush.msra.mxu0 0.0
        %485 = vmatpush.msra.mxu0 0.0
        %486 = vmatpush.msra.mxu0 0.0
        %487 = vmatpush.msra.mxu0 0.0
        %488 = vmatpush.msra.mxu0 0.0
        %489 = vmatpush.msra.mxu0 %v469
        %490 = vmatpush.msra.mxu0 %v468
        %491 = vmatpush.msra.mxu0 %v467
        %492 = vmatpush.msra.mxu0 %v466
        %493 = vmatmul.f32.gmra.mxu0 %v472
        %v494 = vpop.f32.mrf.mxu0
        %v495 = vadd.f32 %v470, %v494
        %496 = vmatmul.f32.gmra.mxu0 %v475
        %v497 = vpop.f32.mrf.mxu0
        %v498 = vadd.f32 %v470, %v497
        %499 = vdwg.mxu0
        %502 = vrot.lane.b32.xlu0 %v495, 96
        %v503 = vpop.permute.xlu0 %502
        %504 = vrot.lane.b32.xlu0 %v498, 96
        %v505 = vpop.permute.xlu0 %504
        %vm506 = vcmask 64512
        %v507 = vsel %vm506, %v495, 0
        %v509 = vsel %vm506, %v498, 0
        %v511 = vsel %vm506, %v503, 0
        %v513 = vsel %vm506, %v505, 0
        %515 = vmatpush.xpose.msra.mxu0 0.0
        %516 = vmatpush.xpose.msra.mxu0 0.0
        %517 = vmatpush.xpose.msra.mxu0 0.0
        %518 = vmatpush.xpose.msra.mxu0 0.0
        %519 = vmatpush.xpose.msra.mxu0 0.0
        %520 = vmatpush.xpose.msra.mxu0 0.0
        %521 = vmatpush.xpose.msra.mxu0 0.0
        %522 = vmatpush.xpose.msra.mxu0 0.0
        %523 = vmatpush.xpose.msra.mxu0 0.0
        %524 = vmatpush.xpose.msra.mxu0 0.0
        %525 = vmatpush.xpose.msra.mxu0 0.0
        %526 = vmatpush.xpose.msra.mxu0 0.0
        %527 = vmatpush.xpose.msra.mxu0 0.0
        %528 = vmatpush.xpose.msra.mxu0 0.0
        %529 = vmatpush.xpose.msra.mxu0 %v513
        %530 = vmatpush.xpose.msra.mxu0 %v511
        %531 = vmatmul.f32.gmra.mxu0 %v507
        %v532 = vpop.f32.mrf.mxu0
        %v533 = vadd.f32 0.0, %v532
        %534 = vmatmul.f32.gmra.mxu0 %v509
        %v535 = vpop.f32.mrf.mxu0
        %v536 = vadd.f32 0.0, %v535
        %537 = vdwg.mxu0
        %v538 = vmul.f32 %v533, 0.35355338
        %v539 = vmul.f32 %v536, 0.35355338
        %v541 = vperm.slane %v464, 0
        %v543 = vadd.f32 %v538, %v541
        %v544 = vadd.f32 %v539, %v541
        %vm545 = vcmask 130048
        %v546 = vsel %vm545, %v543, -inf
        %547 = vmax.xlane.f32.xlu0 %v546
        %v548 = vpop.xlane.xlu0 %547
        %v549 = vsel %vm545, %v544, -inf
        %550 = vmax.xlane.f32.xlu0 %v549
        %v551 = vpop.xlane.xlu0 %550
        %v552 = vsub.f32 %v543, %v548
        %v553 = vsub.f32 %v544, %v551
        %v554 = vmul.f32 %v552, 1.442695
        %v555 = vpow.pop %v554
        %v556 = vmul.f32 %v553, 1.442695
        %v557 = vpow.pop %v556
        %v558 = vsel %vm545, %v555, 0.0
        %559 = vadd.xlane.f32.xlu0 %v558
        %v560 = vpop.xlane.xlu0 %559
        %v561 = vsel %vm545, %v557, 0.0
        %562 = vadd.xlane.f32.xlu0 %v561
        %v563 = vpop.xlane.xlu0 %562
        %v564 = vrcp.pop %v560
        %v565 = vrcp.pop %v563
        %v566 = vmul.f32 %v555, %v564
        %v567 = vmul.f32 %v557, %v565
        %568 = vrot.lane.b32.xlu0 %v495, 64
        %v569 = vpop.permute.xlu0 %568
        %570 = vrot.lane.b32.xlu0 %v498, 64
        %v571 = vpop.permute.xlu0 %570
        %v575 = vsel %vm545, %v566, 0
        %v578 = vsel %vm545, %v567, 0
        %580 = vmatpush.msra.mxu0 0.0
        %581 = vmatpush.msra.mxu0 0.0
        %582 = vmatpush.msra.mxu0 0.0
        %583 = vmatpush.msra.mxu0 0.0
        %584 = vmatpush.msra.mxu0 0.0
        %585 = vmatpush.msra.mxu0 0.0
        %586 = vmatpush.msra.mxu0 0.0
        %587 = vmatpush.msra.mxu0 0.0
        %588 = vmatpush.msra.mxu0 0.0
        %589 = vmatpush.msra.mxu0 0.0
        %590 = vmatpush.msra.mxu0 0.0
        %591 = vmatpush.msra.mxu0 0.0
        %592 = vmatpush.msra.mxu0 0.0
        %593 = vmatpush.msra.mxu0 0.0
        %594 = vmatpush.msra.mxu0 %v571
        %595 = vmatpush.msra.mxu0 %v569
        %596 = vmatmul.f32.gmra.mxu0 %v575
        %v597 = vpop.f32.mrf.mxu0
        %v598 = vadd.f32 0.0, %v597
        %599 = vmatmul.f32.gmra.mxu0 %v578
        %v600 = vpop.f32.mrf.mxu0
        %v601 = vadd.f32 0.0, %v600
        %602 = vdwg.mxu0
        %603 = vst.msk [vmem:[#allocation2] sm:$0xff] %vm506, %v598
        %604 = vst.msk [vmem:[#allocation2 + $0x8] sm:$0xff] %vm506, %v601
        %605 = vrot.lane.b32.xlu0 %v495, 120
        %v606 = vpop.permute.xlu0 %605
        %607 = vrot.lane.b32.xlu0 %v498, 120
        %v608 = vpop.permute.xlu0 %607
        %609 = vrot.lane.b32.xlu0 %v495, 88
        %v610 = vpop.permute.xlu0 %609
        %611 = vrot.lane.b32.xlu0 %v498, 88
        %v612 = vpop.permute.xlu0 %611
        %v613 = vsel %vm506, %v606, 0
        %v615 = vsel %vm506, %v608, 0
        %v617 = vsel %vm506, %v610, 0
        %v619 = vsel %vm506, %v612, 0
        %621 = vmatpush.xpose.msra.mxu0 0.0
        %622 = vmatpush.xpose.msra.mxu0 0.0
        %623 = vmatpush.xpose.msra.mxu0 0.0
        %624 = vmatpush.xpose.msra.mxu0 0.0
        %625 = vmatpush.xpose.msra.mxu0 0.0
        %626 = vmatpush.xpose.msra.mxu0 0.0
        %627 = vmatpush.xpose.msra.mxu0 0.0
        %628 = vmatpush.xpose.msra.mxu0 0.0
        %629 = vmatpush.xpose.msra.mxu0 0.0
        %630 = vmatpush.xpose.msra.mxu0 0.0
        %631 = vmatpush.xpose.msra.mxu0 0.0
        %632 = vmatpush.xpose.msra.mxu0 0.0
        %633 = vmatpush.xpose.msra.mxu0 0.0
        %634 = vmatpush.xpose.msra.mxu0 0.0
        %635 = vmatpush.xpose.msra.mxu0 %v619
        %636 = vmatpush.xpose.msra.mxu0 %v617
        %637 = vmatmul.f32.gmra.mxu0 %v613
        %v638 = vpop.f32.mrf.mxu0
        %v639 = vadd.f32 0.0, %v638
        %640 = vmatmul.f32.gmra.mxu0 %v615
        %v641 = vpop.f32.mrf.mxu0
        %v642 = vadd.f32 0.0, %v641
        %643 = vdwg.mxu0
        %v644 = vmul.f32 %v639, 0.35355338
        %v645 = vmul.f32 %v642, 0.35355338
        %v646 = vadd.f32 %v644, %v541
        %v647 = vadd.f32 %v645, %v541
        %v648 = vsel %vm545, %v646, -inf
        %649 = vmax.xlane.f32.xlu0 %v648
        %v650 = vpop.xlane.xlu0 %649
        %v651 = vsel %vm545, %v647, -inf
        %652 = vmax.xlane.f32.xlu0 %v651
        %v653 = vpop.xlane.xlu0 %652
        %v654 = vsub.f32 %v646, %v650
        %v655 = vsub.f32 %v647, %v653
        %v656 = vmul.f32 %v654, 1.442695
        %v657 = vpow.pop %v656
        %v658 = vmul.f32 %v655, 1.442695
        %v659 = vpow.pop %v658
        %v660 = vsel %vm545, %v657, 0.0
        %661 = vadd.xlane.f32.xlu0 %v660
        %v662 = vpop.xlane.xlu0 %661
        %v663 = vsel %vm545, %v659, 0.0
        %664 = vadd.xlane.f32.xlu0 %v663
        %v665 = vpop.xlane.xlu0 %664
        %v666 = vrcp.pop %v662
        %v667 = vrcp.pop %v665
        %v668 = vmul.f32 %v657, %v666
        %v669 = vmul.f32 %v659, %v667
        %670 = vrot.lane.b32.xlu0 %v495, 56
        %v671 = vpop.permute.xlu0 %670
        %672 = vrot.lane.b32.xlu0 %v498, 56
        %v673 = vpop.permute.xlu0 %672
        %v677 = vsel %vm545, %v668, 0
        %v680 = vsel %vm545, %v669, 0
        %682 = vmatpush.msra.mxu0 0.0
        %683 = vmatpush.msra.mxu0 0.0
        %684 = vmatpush.msra.mxu0 0.0
        %685 = vmatpush.msra.mxu0 0.0
        %686 = vmatpush.msra.mxu0 0.0
        %687 = vmatpush.msra.mxu0 0.0
        %688 = vmatpush.msra.mxu0 0.0
        %689 = vmatpush.msra.mxu0 0.0
        %690 = vmatpush.msra.mxu0 0.0
        %691 = vmatpush.msra.mxu0 0.0
        %692 = vmatpush.msra.mxu0 0.0
        %693 = vmatpush.msra.mxu0 0.0
        %694 = vmatpush.msra.mxu0 0.0
        %695 = vmatpush.msra.mxu0 0.0
        %696 = vmatpush.msra.mxu0 %v673
        %697 = vmatpush.msra.mxu0 %v671
        %698 = vmatmul.f32.gmra.mxu0 %v677
        %v699 = vpop.f32.mrf.mxu0
        %v700 = vadd.f32 0.0, %v699
        %701 = vmatmul.f32.gmra.mxu0 %v680
        %v702 = vpop.f32.mrf.mxu0
        %v703 = vadd.f32 0.0, %v702
        %704 = vdwg.mxu0
        %707 = vrot.lane.b32.xlu0 %v700, 8
        %v708 = vpop.permute.xlu0 %707
        %709 = vrot.lane.b32.xlu0 %v703, 8
        %v710 = vpop.permute.xlu0 %709
        %vm713 = vcmask 130112
        %714 = vst.msk [vmem:[#allocation2] sm:$0xff] %vm713, %v708
        %715 = vst.msk [vmem:[#allocation2 + $0x8] sm:$0xff] %vm713, %v710
        %716 = vrot.lane.b32.xlu0 %v495, 112
        %v717 = vpop.permute.xlu0 %716
        %718 = vrot.lane.b32.xlu0 %v498, 112
        %v719 = vpop.permute.xlu0 %718
        %720 = vrot.lane.b32.xlu0 %v495, 80
        %v721 = vpop.permute.xlu0 %720
        %722 = vrot.lane.b32.xlu0 %v498, 80
        %v723 = vpop.permute.xlu0 %722
        %v724 = vsel %vm506, %v717, 0
        %v726 = vsel %vm506, %v719, 0
        %v728 = vsel %vm506, %v721, 0
        %v730 = vsel %vm506, %v723, 0
        %732 = vmatpush.xpose.msra.mxu0 0.0
        %733 = vmatpush.xpose.msra.mxu0 0.0
        %734 = vmatpush.xpose.msra.mxu0 0.0
        %735 = vmatpush.xpose.msra.mxu0 0.0
        %736 = vmatpush.xpose.msra.mxu0 0.0
        %737 = vmatpush.xpose.msra.mxu0 0.0
        %738 = vmatpush.xpose.msra.mxu0 0.0
        %739 = vmatpush.xpose.msra.mxu0 0.0
        %740 = vmatpush.xpose.msra.mxu0 0.0
        %741 = vmatpush.xpose.msra.mxu0 0.0
        %742 = vmatpush.xpose.msra.mxu0 0.0
        %743 = vmatpush.xpose.msra.mxu0 0.0
        %744 = vmatpush.xpose.msra.mxu0 0.0
        %745 = vmatpush.xpose.msra.mxu0 0.0
        %746 = vmatpush.xpose.msra.mxu0 %v730
        %747 = vmatpush.xpose.msra.mxu0 %v728
        %748 = vmatmul.f32.gmra.mxu0 %v724
        %v749 = vpop.f32.mrf.mxu0
        %v750 = vadd.f32 0.0, %v749
        %751 = vmatmul.f32.gmra.mxu0 %v726
        %v752 = vpop.f32.mrf.mxu0
        %v753 = vadd.f32 0.0, %v752
        %754 = vdwg.mxu0
        %v755 = vmul.f32 %v750, 0.35355338
        %v756 = vmul.f32 %v753, 0.35355338
        %v757 = vadd.f32 %v755, %v541
        %v758 = vadd.f32 %v756, %v541
        %v759 = vsel %vm545, %v757, -inf
        %760 = vmax.xlane.f32.xlu0 %v759
        %v761 = vpop.xlane.xlu0 %760
        %v762 = vsel %vm545, %v758, -inf
        %763 = vmax.xlane.f32.xlu0 %v762
        %v764 = vpop.xlane.xlu0 %763
        %v765 = vsub.f32 %v757, %v761
        %v766 = vsub.f32 %v758, %v764
        %v767 = vmul.f32 %v765, 1.442695
        %v768 = vpow.pop %v767
        %v769 = vmul.f32 %v766, 1.442695
        %v770 = vpow.pop %v769
        %v771 = vsel %vm545, %v768, 0.0
        %772 = vadd.xlane.f32.xlu0 %v771
        %v773 = vpop.xlane.xlu0 %772
        %v774 = vsel %vm545, %v770, 0.0
        %775 = vadd.xlane.f32.xlu0 %v774
        %v776 = vpop.xlane.xlu0 %775
        %v777 = vrcp.pop %v773
        %v778 = vrcp.pop %v776
        %v779 = vmul.f32 %v768, %v777
        %v780 = vmul.f32 %v770, %v778
        %781 = vrot.lane.b32.xlu0 %v495, 48
        %v782 = vpop.permute.xlu0 %781
        %783 = vrot.lane.b32.xlu0 %v498, 48
        %v784 = vpop.permute.xlu0 %783
        %v788 = vsel %vm545, %v779, 0
        %v791 = vsel %vm545, %v780, 0
        %793 = vmatpush.msra.mxu0 0.0
        %794 = vmatpush.msra.mxu0 0.0
        %795 = vmatpush.msra.mxu0 0.0
        %796 = vmatpush.msra.mxu0 0.0
        %797 = vmatpush.msra.mxu0 0.0
        %798 = vmatpush.msra.mxu0 0.0
        %799 = vmatpush.msra.mxu0 0.0
        %800 = vmatpush.msra.mxu0 0.0
        %801 = vmatpush.msra.mxu0 0.0
        %802 = vmatpush.msra.mxu0 0.0
        %803 = vmatpush.msra.mxu0 0.0
        %804 = vmatpush.msra.mxu0 0.0
        %805 = vmatpush.msra.mxu0 0.0
        %806 = vmatpush.msra.mxu0 0.0
        %807 = vmatpush.msra.mxu0 %v784
        %808 = vmatpush.msra.mxu0 %v782
        %809 = vmatmul.f32.gmra.mxu0 %v788
        %v810 = vpop.f32.mrf.mxu0
        %v811 = vadd.f32 0.0, %v810
        %812 = vmatmul.f32.gmra.mxu0 %v791
        %v813 = vpop.f32.mrf.mxu0
        %v814 = vadd.f32 0.0, %v813
        %815 = vdwg.mxu0
        %818 = vrot.lane.b32.xlu0 %v811, 16
        %v819 = vpop.permute.xlu0 %818
        %820 = vrot.lane.b32.xlu0 %v814, 16
        %v821 = vpop.permute.xlu0 %820
        %vm824 = vcmask 195712
        %825 = vst.msk [vmem:[#allocation2] sm:$0xff] %vm824, %v819
        %826 = vst.msk [vmem:[#allocation2 + $0x8] sm:$0xff] %vm824, %v821
        %827 = vrot.lane.b32.xlu0 %v495, 104
        %v828 = vpop.permute.xlu0 %827
        %829 = vrot.lane.b32.xlu0 %v498, 104
        %v830 = vpop.permute.xlu0 %829
        %831 = vrot.lane.b32.xlu0 %v495, 72
        %v832 = vpop.permute.xlu0 %831
        %833 = vrot.lane.b32.xlu0 %v498, 72
        %v834 = vpop.permute.xlu0 %833
        %v835 = vsel %vm506, %v828, 0
        %v837 = vsel %vm506, %v830, 0
        %v839 = vsel %vm506, %v832, 0
        %v841 = vsel %vm506, %v834, 0
        %843 = vmatpush.xpose.msra.mxu0 0.0
        %844 = vmatpush.xpose.msra.mxu0 0.0
        %845 = vmatpush.xpose.msra.mxu0 0.0
        %846 = vmatpush.xpose.msra.mxu0 0.0
        %847 = vmatpush.xpose.msra.mxu0 0.0
        %848 = vmatpush.xpose.msra.mxu0 0.0
        %849 = vmatpush.xpose.msra.mxu0 0.0
        %850 = vmatpush.xpose.msra.mxu0 0.0
        %851 = vmatpush.xpose.msra.mxu0 0.0
        %852 = vmatpush.xpose.msra.mxu0 0.0
        %853 = vmatpush.xpose.msra.mxu0 0.0
        %854 = vmatpush.xpose.msra.mxu0 0.0
        %855 = vmatpush.xpose.msra.mxu0 0.0
        %856 = vmatpush.xpose.msra.mxu0 0.0
        %857 = vmatpush.xpose.msra.mxu0 %v841
        %858 = vmatpush.xpose.msra.mxu0 %v839
        %859 = vmatmul.f32.gmra.mxu0 %v835
        %v860 = vpop.f32.mrf.mxu0
        %v861 = vadd.f32 0.0, %v860
        %862 = vmatmul.f32.gmra.mxu0 %v837
        %v863 = vpop.f32.mrf.mxu0
        %v864 = vadd.f32 0.0, %v863
        %865 = vdwg.mxu0
        %v866 = vmul.f32 %v861, 0.35355338
        %v867 = vmul.f32 %v864, 0.35355338
        %v868 = vadd.f32 %v866, %v541
        %v869 = vadd.f32 %v867, %v541
        %v870 = vsel %vm545, %v868, -inf
        %871 = vmax.xlane.f32.xlu0 %v870
        %v872 = vpop.xlane.xlu0 %871
        %v873 = vsel %vm545, %v869, -inf
        %874 = vmax.xlane.f32.xlu0 %v873
        %v875 = vpop.xlane.xlu0 %874
        %v876 = vsub.f32 %v868, %v872
        %v877 = vsub.f32 %v869, %v875
        %v878 = vmul.f32 %v876, 1.442695
        %v879 = vpow.pop %v878
        %v880 = vmul.f32 %v877, 1.442695
        %v881 = vpow.pop %v880
        %v882 = vsel %vm545, %v879, 0.0
        %883 = vadd.xlane.f32.xlu0 %v882
        %v884 = vpop.xlane.xlu0 %883
        %v885 = vsel %vm545, %v881, 0.0
        %886 = vadd.xlane.f32.xlu0 %v885
        %v887 = vpop.xlane.xlu0 %886
        %v888 = vrcp.pop %v884
        %v889 = vrcp.pop %v887
        %v890 = vmul.f32 %v879, %v888
        %v891 = vmul.f32 %v881, %v889
        %892 = vrot.lane.b32.xlu0 %v495, 40
        %v893 = vpop.permute.xlu0 %892
        %894 = vrot.lane.b32.xlu0 %v498, 40
        %v895 = vpop.permute.xlu0 %894
        %v899 = vsel %vm545, %v890, 0
        %v902 = vsel %vm545, %v891, 0
        %904 = vmatpush.msra.mxu0 0.0
        %905 = vmatpush.msra.mxu0 0.0
        %906 = vmatpush.msra.mxu0 0.0
        %907 = vmatpush.msra.mxu0 0.0
        %908 = vmatpush.msra.mxu0 0.0
        %909 = vmatpush.msra.mxu0 0.0
        %910 = vmatpush.msra.mxu0 0.0
        %911 = vmatpush.msra.mxu0 0.0
        %912 = vmatpush.msra.mxu0 0.0
        %913 = vmatpush.msra.mxu0 0.0
        %914 = vmatpush.msra.mxu0 0.0
        %915 = vmatpush.msra.mxu0 0.0
        %916 = vmatpush.msra.mxu0 0.0
        %917 = vmatpush.msra.mxu0 0.0
        %918 = vmatpush.msra.mxu0 %v895
        %919 = vmatpush.msra.mxu0 %v893
        %920 = vmatmul.f32.gmra.mxu0 %v899
        %v921 = vpop.f32.mrf.mxu0
        %v922 = vadd.f32 0.0, %v921
        %923 = vmatmul.f32.gmra.mxu0 %v902
        %v924 = vpop.f32.mrf.mxu0
        %v925 = vadd.f32 0.0, %v924
        %926 = vdwg.mxu0
        %929 = vrot.lane.b32.xlu0 %v922, 24
        %v930 = vpop.permute.xlu0 %929
        %931 = vrot.lane.b32.xlu0 %v925, 24
        %v932 = vpop.permute.xlu0 %931
        %vm935 = vcmask 261312
        %936 = vst.msk [vmem:[#allocation2] sm:$0xff] %vm935, %v930
        %937 = vst.msk [vmem:[#allocation2 + $0x8] sm:$0xff] %vm935, %v932
        %v938 = vld [vmem:[#allocation2] sm:$0xff]
        %v939 = vld [vmem:[#allocation2 + $0x8] sm:$0xff]
        %v940 = vld [vmem:[%s6] sm:$0xff]
        %v941 = vld [vmem:[%s6 + $0x8] sm:$0xff]
        %v942 = vld [vmem:[%s6 + $0x10] sm:$0xff]
        %v943 = vld [vmem:[%s6 + $0x18] sm:$0xff]
        %v944 = vperm.slane %v465, 1
        %v946 = vsel %vm406, %v938, 0
        %v949 = vsel %vm406, %v939, 0
        %951 = vmatpush.msra.mxu0 0.0
        %952 = vmatpush.msra.mxu0 0.0
        %953 = vmatpush.msra.mxu0 0.0
        %954 = vmatpush.msra.mxu0 0.0
        %955 = vmatpush.msra.mxu0 0.0
        %956 = vmatpush.msra.mxu0 0.0
        %957 = vmatpush.msra.mxu0 0.0
        %958 = vmatpush.msra.mxu0 0.0
        %959 = vmatpush.msra.mxu0 0.0
        %960 = vmatpush.msra.mxu0 0.0
        %961 = vmatpush.msra.mxu0 0.0
        %962 = vmatpush.msra.mxu0 0.0
        %963 = vmatpush.msra.mxu0 %v943
        %964 = vmatpush.msra.mxu0 %v942
        %965 = vmatpush.msra.mxu0 %v941
        %966 = vmatpush.msra.mxu0 %v940
        %967 = vmatmul.f32.gmra.mxu0 %v946
        %v968 = vpop.f32.mrf.mxu0
        %v969 = vadd.f32 %v944, %v968
        %970 = vmatmul.f32.gmra.mxu0 %v949
        %v971 = vpop.f32.mrf.mxu0
        %v972 = vadd.f32 %v944, %v971
        %973 = vdwg.mxu0
        %v974 = vadd.f32 %v462, %v969
        %v975 = vadd.f32 %v463, %v972
        %v976 = vsel %vm406, %v974, 0.0
        %977 = vadd.xlane.f32.xlu0 %v976
        %v978 = vpop.xlane.xlu0 %977
        %v979 = vsel %vm406, %v975, 0.0
        %980 = vadd.xlane.f32.xlu0 %v979
        %v981 = vpop.xlane.xlu0 %980
        %v982 = vmul.f32 %v978, %v419
        %v983 = vmul.f32 %v981, %v419
        %v984 = vsub.f32 %v974, %v982
        %v985 = vsub.f32 %v975, %v983
        %v986 = vmul.f32 %v984, %v984
        %v987 = vmul.f32 %v985, %v985
        %v988 = vsel %vm406, %v986, 0.0
        %989 = vadd.xlane.f32.xlu0 %v988
        %v990 = vpop.xlane.xlu0 %989
        %v991 = vsel %vm406, %v987, 0.0
        %992 = vadd.xlane.f32.xlu0 %v991
        %v993 = vpop.xlane.xlu0 %992
        %v994 = vmul.f32 %v990, %v419
        %v995 = vmul.f32 %v993, %v419
        %v996 = vadd.f32 %v994, 1e-12
        %v997 = vadd.f32 %v995, 1e-12
        %v998 = vrsqrt.pop %v996
        %v999 = vmul.f32 %v998, %v996
        %v1000 = vmul.f32 %v999, %v998
        %v1001 = vmul.f32 0.5, %v1000
        %v1002 = vsub.f32 1.5, %v1001
        %v1003 = vmul.f32 %v998, %v1002
        %vm1004 = vweird.f32 %v996
        %vm1005 = vweird.f32 %v998
        %vm1006 = vmor %vm1004, %vm1005
        %v1007 = vsel %vm1006, %v998, %v1003
        %v1008 = vrsqrt.pop %v997
        %v1009 = vmul.f32 %v1008, %v997
        %v1010 = vmul.f32 %v1009, %v1008
        %v1011 = vmul.f32 0.5, %v1010
        %v1012 = vsub.f32 1.5, %v1011
        %v1013 = vmul.f32 %v1008, %v1012
        %vm1014 = vweird.f32 %v997
        %vm1015 = vweird.f32 %v1008
        %vm1016 = vmor %vm1014, %vm1015
        %v1017 = vsel %vm1016, %v1008, %v1013
        %v1018 = vmul.f32 %v984, %v1007
        %v1019 = vmul.f32 %v985, %v1017
        %v1020 = vperm.slane %v465, 2
        %v1021 = vmul.f32 %v1018, %v1020
        %v1022 = vmul.f32 %v1019, %v1020
        %v1023 = vperm.slane %v465, 3
        %v1024 = vadd.f32 %v1021, %v1023
        %v1025 = vadd.f32 %v1022, %v1023
        %v1026 = vld [vmem:[%s7] sm:$0xff]
        %v1027 = vld [vmem:[%s7 + $0x8] sm:$0xff]
        %v1028 = vld [vmem:[%s7 + $0x10] sm:$0xff]
        %v1029 = vld [vmem:[%s7 + $0x18] sm:$0xff]
        %v1030 = vperm.slane %v465, 4
        %v1032 = vsel %vm406, %v1024, 0
        %v1035 = vsel %vm406, %v1025, 0
        %1037 = vmatpush.msra.mxu0 0.0
        %1038 = vmatpush.msra.mxu0 0.0
        %1039 = vmatpush.msra.mxu0 0.0
        %1040 = vmatpush.msra.mxu0 0.0
        %1041 = vmatpush.msra.mxu0 0.0
        %1042 = vmatpush.msra.mxu0 0.0
        %1043 = vmatpush.msra.mxu0 0.0
        %1044 = vmatpush.msra.mxu0 0.0
        %1045 = vmatpush.msra.mxu0 0.0
        %1046 = vmatpush.msra.mxu0 0.0
        %1047 = vmatpush.msra.mxu0 0.0
        %1048 = vmatpush.msra.mxu0 0.0
        %1049 = vmatpush.msra.mxu0 %v1029
        %1050 = vmatpush.msra.mxu0 %v1028
        %1051 = vmatpush.msra.mxu0 %v1027
        %1052 = vmatpush.msra.mxu0 %v1026
        %1053 = vmatmul.f32.gmra.mxu0 %v1032
        %v1054 = vpop.f32.mrf.mxu0
        %v1055 = vadd.f32 %v1030, %v1054
        %1056 = vmatmul.f32.gmra.mxu0 %v1035
        %v1057 = vpop.f32.mrf.mxu0
        %v1058 = vadd.f32 %v1030, %v1057
        %1059 = vdwg.mxu0
        %v1060 = vmul.f32 %v1055, %v1055
        %v1061 = vmul.f32 %v1058, %v1058
        %v1062 = vmul.f32 %v1055, %v1060
        %v1063 = vmul.f32 %v1058, %v1061
        %v1064 = vmul.f32 %v1062, 0.044715
        %v1065 = vmul.f32 %v1063, 0.044715
        %v1066 = vadd.f32 %v1055, %v1064
        %v1067 = vadd.f32 %v1058, %v1065
        %v1068 = vmul.f32 %v1066, 0.7978846
        %v1069 = vmul.f32 %v1067, 0.7978846
        %v1070 = vtanh.pop %v1068
        %v1071 = vtanh.pop %v1069
        %v1072 = vadd.f32 %v1070, 1.0
        %v1073 = vadd.f32 %v1071, 1.0
        %v1074 = vmul.f32 %v1072, 0.5
        %v1075 = vmul.f32 %v1073, 0.5
        %v1076 = vmul.f32 %v1055, %v1074
        %v1077 = vmul.f32 %v1058, %v1075
        %v1078 = vld [vmem:[%s8] sm:$0xff]
        %v1079 = vld [vmem:[%s8 + $0x8] sm:$0xff]
        %v1080 = vld [vmem:[%s8 + $0x10] sm:$0xff]
        %v1081 = vld [vmem:[%s8 + $0x18] sm:$0xff]
        %v1082 = vld [vmem:[%s8 + $0x20] sm:$0xff]
        %v1083 = vld [vmem:[%s8 + $0x28] sm:$0xff]
        %v1084 = vld [vmem:[%s8 + $0x30] sm:$0xff]
        %v1085 = vld [vmem:[%s8 + $0x38] sm:$0xff]
        %v1086 = vperm.slane %v465, 5
        %vm1087 = vcmask 523264
        %v1089 = vsel %vm1087, %v1076, 0
        %v1092 = vsel %vm1087, %v1077, 0
        %1094 = vmatpush.msra.mxu0 0.0
        %1095 = vmatpush.msra.mxu0 0.0
        %1096 = vmatpush.msra.mxu0 0.0
        %1097 = vmatpush.msra.mxu0 0.0
        %1098 = vmatpush.msra.mxu0 0.0
        %1099 = vmatpush.msra.mxu0 0.0
        %1100 = vmatpush.msra.mxu0 0.0
        %1101 = vmatpush.msra.mxu0 0.0
        %1102 = vmatpush.msra.mxu0 %v1085
        %1103 = vmatpush.msra.mxu0 %v1084
        %1104 = vmatpush.msra.mxu0 %v1083
        %1105 = vmatpush.msra.mxu0 %v1082
        %1106 = vmatpush.msra.mxu0 %v1081
        %1107 = vmatpush.msra.mxu0 %v1080
        %1108 = vmatpush.msra.mxu0 %v1079
        %1109 = vmatpush.msra.mxu0 %v1078
        %1110 = vmatmul.f32.gmra.mxu0 %v1089
        %v1111 = vpop.f32.mrf.mxu0
        %v1112 = vadd.f32 %v1086, %v1111
        %1113 = vmatmul.f32.gmra.mxu0 %v1092
        %v1114 = vpop.f32.mrf.mxu0
        %v1115 = vadd.f32 %v1086, %v1114
        %1116 = vdwg.mxu0
        %v1117 = vadd.f32 %v1024, %v1112
        %v1118 = vadd.f32 %v1025, %v1115
        %v1119 = vsel %vm406, %v1117, 0.0
        %1120 = vadd.xlane.f32.xlu0 %v1119
        %v1121 = vpop.xlane.xlu0 %1120
        %v1122 = vsel %vm406, %v1118, 0.0
        %1123 = vadd.xlane.f32.xlu0 %v1122
        %v1124 = vpop.xlane.xlu0 %1123
        %v1125 = vmul.f32 %v1121, %v419
        %v1126 = vmul.f32 %v1124, %v419
        %v1127 = vsub.f32 %v1117, %v1125
        %v1128 = vsub.f32 %v1118, %v1126
        %v1129 = vmul.f32 %v1127, %v1127
        %v1130 = vmul.f32 %v1128, %v1128
        %v1131 = vsel %vm406, %v1129, 0.0
        %1132 = vadd.xlane.f32.xlu0 %v1131
        %v1133 = vpop.xlane.xlu0 %1132
        %v1134 = vsel %vm406, %v1130, 0.0
        %1135 = vadd.xlane.f32.xlu0 %v1134
        %v1136 = vpop.xlane.xlu0 %1135
        %v1137 = vmul.f32 %v1133, %v419
        %v1138 = vmul.f32 %v1136, %v419
        %v1139 = vadd.f32 %v1137, 1e-12
        %v1140 = vadd.f32 %v1138, 1e-12
        %v1141 = vrsqrt.pop %v1139
        %v1142 = vmul.f32 %v1141, %v1139
        %v1143 = vmul.f32 %v1142, %v1141
        %v1144 = vmul.f32 0.5, %v1143
        %v1145 = vsub.f32 1.5, %v1144
        %v1146 = vmul.f32 %v1141, %v1145
        %vm1147 = vweird.f32 %v1139
        %vm1148 = vweird.f32 %v1141
        %vm1149 = vmor %vm1147, %vm1148
        %v1150 = vsel %vm1149, %v1141, %v1146
        %v1151 = vrsqrt.pop %v1140
        %v1152 = vmul.f32 %v1151, %v1140
        %v1153 = vmul.f32 %v1152, %v1151
        %v1154 = vmul.f32 0.5, %v1153
        %v1155 = vsub.f32 1.5, %v1154
        %v1156 = vmul.f32 %v1151, %v1155
        %vm1157 = vweird.f32 %v1140
        %vm1158 = vweird.f32 %v1151
        %vm1159 = vmor %vm1157, %vm1158
        %v1160 = vsel %vm1159, %v1151, %v1156
        %v1161 = vmul.f32 %v1127, %v1150
        %v1162 = vmul.f32 %v1128, %v1160
        %v1163 = vperm.slane %v465, 6
        %v1164 = vmul.f32 %v1161, %v1163
        %v1165 = vmul.f32 %v1162, %v1163
        %v1166 = vperm.slane %v465, 7
        %v1167 = vadd.f32 %v1164, %v1166
        %v1168 = vadd.f32 %v1165, %v1166
        %s1169 = scalar_lea.vmem %s9, 8
        %v1170 = vld [vmem:[%s1169] sm:$0xff]
        %s1171 = scalar_lea.vmem %s5, 32
        %v1172 = vld [vmem:[%s1171] sm:$0xff]
        %v1173 = vld [vmem:[%s1171 + $0x8] sm:$0xff]
        %v1174 = vld [vmem:[%s1171 + $0x10] sm:$0xff]
        %v1175 = vld [vmem:[%s1171 + $0x18] sm:$0xff]
        %v1176 = vperm.slane %v1170, 0
        %v1178 = vsel %vm406, %v1167, 0
        %v1181 = vsel %vm406, %v1168, 0
        %1183 = vmatpush.msra.mxu0 0.0
        %1184 = vmatpush.msra.mxu0 0.0
        %1185 = vmatpush.msra.mxu0 0.0
        %1186 = vmatpush.msra.mxu0 0.0
        %1187 = vmatpush.msra.mxu0 0.0
        %1188 = vmatpush.msra.mxu0 0.0
        %1189 = vmatpush.msra.mxu0 0.0
        %1190 = vmatpush.msra.mxu0 0.0
        %1191 = vmatpush.msra.mxu0 0.0
        %1192 = vmatpush.msra.mxu0 0.0
        %1193 = vmatpush.msra.mxu0 0.0
        %1194 = vmatpush.msra.mxu0 0.0
        %1195 = vmatpush.msra.mxu0 %v1175
        %1196 = vmatpush.msra.mxu0 %v1174
        %1197 = vmatpush.msra.mxu0 %v1173
        %1198 = vmatpush.msra.mxu0 %v1172
        %1199 = vmatmul.f32.gmra.mxu0 %v1178
        %v1200 = vpop.f32.mrf.mxu0
        %v1201 = vadd.f32 %v1176, %v1200
        %1202 = vmatmul.f32.gmra.mxu0 %v1181
        %v1203 = vpop.f32.mrf.mxu0
        %v1204 = vadd.f32 %v1176, %v1203
        %1205 = vdwg.mxu0
        %1208 = vrot.lane.b32.xlu0 %v1201, 96
        %v1209 = vpop.permute.xlu0 %1208
        %1210 = vrot.lane.b32.xlu0 %v1204, 96
        %v1211 = vpop.permute.xlu0 %1210
        %v1212 = vsel %vm506, %v1201, 0
        %v1214 = vsel %vm506, %v1204, 0
        %v1216 = vsel %vm506, %v1209, 0
        %v1218 = vsel %vm506, %v1211, 0
        %1220 = vmatpush.xpose.msra.mxu0 0.0
        %1221 = vmatpush.xpose.msra.mxu0 0.0
        %1222 = vmatpush.xpose.msra.mxu0 0.0
        %1223 = vmatpush.xpose.msra.mxu0 0.0
        %1224 = vmatpush.xpose.msra.mxu0 0.0
        %1225 = vmatpush.xpose.msra.mxu0 0.0
        %1226 = vmatpush.xpose.msra.mxu0 0.0
        %1227 = vmatpush.xpose.msra.mxu0 0.0
        %1228 = vmatpush.xpose.msra.mxu0 0.0
        %1229 = vmatpush.xpose.msra.mxu0 0.0
        %1230 = vmatpush.xpose.msra.mxu0 0.0
        %1231 = vmatpush.xpose.msra.mxu0 0.0
        %1232 = vmatpush.xpose.msra.mxu0 0.0
        %1233 = vmatpush.xpose.msra.mxu0 0.0
        %1234 = vmatpush.xpose.msra.mxu0 %v1218
        %1235 = vmatpush.xpose.msra.mxu0 %v1216
        %1236 = vmatmul.f32.gmra.mxu0 %v1212
        %v1237 = vpop.f32.mrf.mxu0
        %v1238 = vadd.f32 0.0, %v1237
        %1239 = vmatmul.f32.gmra.mxu0 %v1214
        %v1240 = vpop.f32.mrf.mxu0
        %v1241 = vadd.f32 0.0, %v1240
        %1242 = vdwg.mxu0
        %v1243 = vmul.f32 %v1238, 0.35355338
        %v1244 = vmul.f32 %v1241, 0.35355338
        %v1245 = vadd.f32 %v1243, %v541
        %v1246 = vadd.f32 %v1244, %v541
        %v1247 = vsel %vm545, %v1245, -inf
        %1248 = vmax.xlane.f32.xlu0 %v1247
        %v1249 = vpop.xlane.xlu0 %1248
        %v1250 = vsel %vm545, %v1246, -inf
        %1251 = vmax.xlane.f32.xlu0 %v1250
        %v1252 = vpop.xlane.xlu0 %1251
        %v1253 = vsub.f32 %v1245, %v1249
        %v1254 = vsub.f32 %v1246, %v1252
        %v1255 = vmul.f32 %v1253, 1.442695
        %v1256 = vpow.pop %v1255
        %v1257 = vmul.f32 %v1254, 1.442695
        %v1258 = vpow.pop %v1257
        %v1259 = vsel %vm545, %v1256, 0.0
        %1260 = vadd.xlane.f32.xlu0 %v1259
        %v1261 = vpop.xlane.xlu0 %1260
        %v1262 = vsel %vm545, %v1258, 0.0
        %1263 = vadd.xlane.f32.xlu0 %v1262
        %v1264 = vpop.xlane.xlu0 %1263
        %v1265 = vrcp.pop %v1261
        %v1266 = vrcp.pop %v1264
        %v1267 = vmul.f32 %v1256, %v1265
        %v1268 = vmul.f32 %v1258, %v1266
        %1269 = vrot.lane.b32.xlu0 %v1201, 64
        %v1270 = vpop.permute.xlu0 %1269
        %1271 = vrot.lane.b32.xlu0 %v1204, 64
        %v1272 = vpop.permute.xlu0 %1271
        %v1276 = vsel %vm545, %v1267, 0
        %v1279 = vsel %vm545, %v1268, 0
        %1281 = vmatpush.msra.mxu0 0.0
        %1282 = vmatpush.msra.mxu0 0.0
        %1283 = vmatpush.msra.mxu0 0.0
        %1284 = vmatpush.msra.mxu0 0.0
        %1285 = vmatpush.msra.mxu0 0.0
        %1286 = vmatpush.msra.mxu0 0.0
        %1287 = vmatpush.msra.mxu0 0.0
        %1288 = vmatpush.msra.mxu0 0.0
        %1289 = vmatpush.msra.mxu0 0.0
        %1290 = vmatpush.msra.mxu0 0.0
        %1291 = vmatpush.msra.mxu0 0.0
        %1292 = vmatpush.msra.mxu0 0.0
        %1293 = vmatpush.msra.mxu0 0.0
        %1294 = vmatpush.msra.mxu0 0.0
        %1295 = vmatpush.msra.mxu0 %v1272
        %1296 = vmatpush.msra.mxu0 %v1270
        %1297 = vmatmul.f32.gmra.mxu0 %v1276
        %v1298 = vpop.f32.mrf.mxu0
        %v1299 = vadd.f32 0.0, %v1298
        %1300 = vmatmul.f32.gmra.mxu0 %v1279
        %v1301 = vpop.f32.mrf.mxu0
        %v1302 = vadd.f32 0.0, %v1301
        %1303 = vdwg.mxu0
        %1304 = vst.msk [vmem:[#allocation2] sm:$0xff] %vm506, %v1299
        %1305 = vst.msk [vmem:[#allocation2 + $0x8] sm:$0xff] %vm506, %v1302
        %1306 = vrot.lane.b32.xlu0 %v1201, 120
        %v1307 = vpop.permute.xlu0 %1306
        %1308 = vrot.lane.b32.xlu0 %v1204, 120
        %v1309 = vpop.permute.xlu0 %1308
        %1310 = vrot.lane.b32.xlu0 %v1201, 88
        %v1311 = vpop.permute.xlu0 %1310
        %1312 = vrot.lane.b32.xlu0 %v1204, 88
        %v1313 = vpop.permute.xlu0 %1312
        %v1314 = vsel %vm506, %v1307, 0
        %v1316 = vsel %vm506, %v1309, 0
        %v1318 = vsel %vm506, %v1311, 0
        %v1320 = vsel %vm506, %v1313, 0
        %1322 = vmatpush.xpose.msra.mxu0 0.0
        %1323 = vmatpush.xpose.msra.mxu0 0.0
        %1324 = vmatpush.xpose.msra.mxu0 0.0
        %1325 = vmatpush.xpose.msra.mxu0 0.0
        %1326 = vmatpush.xpose.msra.mxu0 0.0
        %1327 = vmatpush.xpose.msra.mxu0 0.0
        %1328 = vmatpush.xpose.msra.mxu0 0.0
        %1329 = vmatpush.xpose.msra.mxu0 0.0
        %1330 = vmatpush.xpose.msra.mxu0 0.0
        %1331 = vmatpush.xpose.msra.mxu0 0.0
        %1332 = vmatpush.xpose.msra.mxu0 0.0
        %1333 = vmatpush.xpose.msra.mxu0 0.0
        %1334 = vmatpush.xpose.msra.mxu0 0.0
        %1335 = vmatpush.xpose.msra.mxu0 0.0
        %1336 = vmatpush.xpose.msra.mxu0 %v1320
        %1337 = vmatpush.xpose.msra.mxu0 %v1318
        %1338 = vmatmul.f32.gmra.mxu0 %v1314
        %v1339 = vpop.f32.mrf.mxu0
        %v1340 = vadd.f32 0.0, %v1339
        %1341 = vmatmul.f32.gmra.mxu0 %v1316
        %v1342 = vpop.f32.mrf.mxu0
        %v1343 = vadd.f32 0.0, %v1342
        %1344 = vdwg.mxu0
        %v1345 = vmul.f32 %v1340, 0.35355338
        %v1346 = vmul.f32 %v1343, 0.35355338
        %v1347 = vadd.f32 %v1345, %v541
        %v1348 = vadd.f32 %v1346, %v541
        %v1349 = vsel %vm545, %v1347, -inf
        %1350 = vmax.xlane.f32.xlu0 %v1349
        %v1351 = vpop.xlane.xlu0 %1350
        %v1352 = vsel %vm545, %v1348, -inf
        %1353 = vmax.xlane.f32.xlu0 %v1352
        %v1354 = vpop.xlane.xlu0 %1353
        %v1355 = vsub.f32 %v1347, %v1351
        %v1356 = vsub.f32 %v1348, %v1354
        %v1357 = vmul.f32 %v1355, 1.442695
        %v1358 = vpow.pop %v1357
        %v1359 = vmul.f32 %v1356, 1.442695
        %v1360 = vpow.pop %v1359
        %v1361 = vsel %vm545, %v1358, 0.0
        %1362 = vadd.xlane.f32.xlu0 %v1361
        %v1363 = vpop.xlane.xlu0 %1362
        %v1364 = vsel %vm545, %v1360, 0.0
        %1365 = vadd.xlane.f32.xlu0 %v1364
        %v1366 = vpop.xlane.xlu0 %1365
        %v1367 = vrcp.pop %v1363
        %v1368 = vrcp.pop %v1366
        %v1369 = vmul.f32 %v1358, %v1367
        %v1370 = vmul.f32 %v1360, %v1368
        %1371 = vrot.lane.b32.xlu0 %v1201, 56
        %v1372 = vpop.permute.xlu0 %1371
        %1373 = vrot.lane.b32.xlu0 %v1204, 56
        %v1374 = vpop.permute.xlu0 %1373
        %v1378 = vsel %vm545, %v1369, 0
        %v1381 = vsel %vm545, %v1370, 0
        %1383 = vmatpush.msra.mxu0 0.0
        %1384 = vmatpush.msra.mxu0 0.0
        %1385 = vmatpush.msra.mxu0 0.0
        %1386 = vmatpush.msra.mxu0 0.0
        %1387 = vmatpush.msra.mxu0 0.0
        %1388 = vmatpush.msra.mxu0 0.0
        %1389 = vmatpush.msra.mxu0 0.0
        %1390 = vmatpush.msra.mxu0 0.0
        %1391 = vmatpush.msra.mxu0 0.0
        %1392 = vmatpush.msra.mxu0 0.0
        %1393 = vmatpush.msra.mxu0 0.0
        %1394 = vmatpush.msra.mxu0 0.0
        %1395 = vmatpush.msra.mxu0 0.0
        %1396 = vmatpush.msra.mxu0 0.0
        %1397 = vmatpush.msra.mxu0 %v1374
        %1398 = vmatpush.msra.mxu0 %v1372
        %1399 = vmatmul.f32.gmra.mxu0 %v1378
        %v1400 = vpop.f32.mrf.mxu0
        %v1401 = vadd.f32 0.0, %v1400
        %1402 = vmatmul.f32.gmra.mxu0 %v1381
        %v1403 = vpop.f32.mrf.mxu0
        %v1404 = vadd.f32 0.0, %v1403
        %1405 = vdwg.mxu0
        %1408 = vrot.lane.b32.xlu0 %v1401, 8
        %v1409 = vpop.permute.xlu0 %1408
        %1410 = vrot.lane.b32.xlu0 %v1404, 8
        %v1411 = vpop.permute.xlu0 %1410
        %1414 = vst.msk [vmem:[#allocation2] sm:$0xff] %vm713, %v1409
        %1415 = vst.msk [vmem:[#allocation2 + $0x8] sm:$0xff] %vm713, %v1411
        %1416 = vrot.lane.b32.xlu0 %v1201, 112
        %v1417 = vpop.permute.xlu0 %1416
        %1418 = vrot.lane.b32.xlu0 %v1204, 112
        %v1419 = vpop.permute.xlu0 %1418
        %1420 = vrot.lane.b32.xlu0 %v1201, 80
        %v1421 = vpop.permute.xlu0 %1420
        %1422 = vrot.lane.b32.xlu0 %v1204, 80
        %v1423 = vpop.permute.xlu0 %1422
        %v1424 = vsel %vm506, %v1417, 0
        %v1426 = vsel %vm506, %v1419, 0
        %v1428 = vsel %vm506, %v1421, 0
        %v1430 = vsel %vm506, %v1423, 0
        %1432 = vmatpush.xpose.msra.mxu0 0.0
        %1433 = vmatpush.xpose.msra.mxu0 0.0
        %1434 = vmatpush.xpose.msra.mxu0 0.0
        %1435 = vmatpush.xpose.msra.mxu0 0.0
        %1436 = vmatpush.xpose.msra.mxu0 0.0
        %1437 = vmatpush.xpose.msra.mxu0 0.0
        %1438 = vmatpush.xpose.msra.mxu0 0.0
        %1439 = vmatpush.xpose.msra.mxu0 0.0
        %1440 = vmatpush.xpose.msra.mxu0 0.0
        %1441 = vmatpush.xpose.msra.mxu0 0.0
        %1442 = vmatpush.xpose.msra.mxu0 0.0
        %1443 = vmatpush.xpose.msra.mxu0 0.0
        %1444 = vmatpush.xpose.msra.mxu0 0.0
        %1445 = vmatpush.xpose.msra.mxu0 0.0
        %1446 = vmatpush.xpose.msra.mxu0 %v1430
        %1447 = vmatpush.xpose.msra.mxu0 %v1428
        %1448 = vmatmul.f32.gmra.mxu0 %v1424
        %v1449 = vpop.f32.mrf.mxu0
        %v1450 = vadd.f32 0.0, %v1449
        %1451 = vmatmul.f32.gmra.mxu0 %v1426
        %v1452 = vpop.f32.mrf.mxu0
        %v1453 = vadd.f32 0.0, %v1452
        %1454 = vdwg.mxu0
        %v1455 = vmul.f32 %v1450, 0.35355338
        %v1456 = vmul.f32 %v1453, 0.35355338
        %v1457 = vadd.f32 %v1455, %v541
        %v1458 = vadd.f32 %v1456, %v541
        %v1459 = vsel %vm545, %v1457, -inf
        %1460 = vmax.xlane.f32.xlu0 %v1459
        %v1461 = vpop.xlane.xlu0 %1460
        %v1462 = vsel %vm545, %v1458, -inf
        %1463 = vmax.xlane.f32.xlu0 %v1462
        %v1464 = vpop.xlane.xlu0 %1463
        %v1465 = vsub.f32 %v1457, %v1461
        %v1466 = vsub.f32 %v1458, %v1464
        %v1467 = vmul.f32 %v1465, 1.442695
        %v1468 = vpow.pop %v1467
        %v1469 = vmul.f32 %v1466, 1.442695
        %v1470 = vpow.pop %v1469
        %v1471 = vsel %vm545, %v1468, 0.0
        %1472 = vadd.xlane.f32.xlu0 %v1471
        %v1473 = vpop.xlane.xlu0 %1472
        %v1474 = vsel %vm545, %v1470, 0.0
        %1475 = vadd.xlane.f32.xlu0 %v1474
        %v1476 = vpop.xlane.xlu0 %1475
        %v1477 = vrcp.pop %v1473
        %v1478 = vrcp.pop %v1476
        %v1479 = vmul.f32 %v1468, %v1477
        %v1480 = vmul.f32 %v1470, %v1478
        %1481 = vrot.lane.b32.xlu0 %v1201, 48
        %v1482 = vpop.permute.xlu0 %1481
        %1483 = vrot.lane.b32.xlu0 %v1204, 48
        %v1484 = vpop.permute.xlu0 %1483
        %v1488 = vsel %vm545, %v1479, 0
        %v1491 = vsel %vm545, %v1480, 0
        %1493 = vmatpush.msra.mxu0 0.0
        %1494 = vmatpush.msra.mxu0 0.0
        %1495 = vmatpush.msra.mxu0 0.0
        %1496 = vmatpush.msra.mxu0 0.0
        %1497 = vmatpush.msra.mxu0 0.0
        %1498 = vmatpush.msra.mxu0 0.0
        %1499 = vmatpush.msra.mxu0 0.0
        %1500 = vmatpush.msra.mxu0 0.0
        %1501 = vmatpush.msra.mxu0 0.0
        %1502 = vmatpush.msra.mxu0 0.0
        %1503 = vmatpush.msra.mxu0 0.0
        %1504 = vmatpush.msra.mxu0 0.0
        %1505 = vmatpush.msra.mxu0 0.0
        %1506 = vmatpush.msra.mxu0 0.0
        %1507 = vmatpush.msra.mxu0 %v1484
        %1508 = vmatpush.msra.mxu0 %v1482
        %1509 = vmatmul.f32.gmra.mxu0 %v1488
        %v1510 = vpop.f32.mrf.mxu0
        %v1511 = vadd.f32 0.0, %v1510
        %1512 = vmatmul.f32.gmra.mxu0 %v1491
        %v1513 = vpop.f32.mrf.mxu0
        %v1514 = vadd.f32 0.0, %v1513
        %1515 = vdwg.mxu0
        %1518 = vrot.lane.b32.xlu0 %v1511, 16
        %v1519 = vpop.permute.xlu0 %1518
        %1520 = vrot.lane.b32.xlu0 %v1514, 16
        %v1521 = vpop.permute.xlu0 %1520
        %1524 = vst.msk [vmem:[#allocation2] sm:$0xff] %vm824, %v1519
        %1525 = vst.msk [vmem:[#allocation2 + $0x8] sm:$0xff] %vm824, %v1521
        %1526 = vrot.lane.b32.xlu0 %v1201, 104
        %v1527 = vpop.permute.xlu0 %1526
        %1528 = vrot.lane.b32.xlu0 %v1204, 104
        %v1529 = vpop.permute.xlu0 %1528
        %1530 = vrot.lane.b32.xlu0 %v1201, 72
        %v1531 = vpop.permute.xlu0 %1530
        %1532 = vrot.lane.b32.xlu0 %v1204, 72
        %v1533 = vpop.permute.xlu0 %1532
        %v1534 = vsel %vm506, %v1527, 0
        %v1536 = vsel %vm506, %v1529, 0
        %v1538 = vsel %vm506, %v1531, 0
        %v1540 = vsel %vm506, %v1533, 0
        %1542 = vmatpush.xpose.msra.mxu0 0.0
        %1543 = vmatpush.xpose.msra.mxu0 0.0
        %1544 = vmatpush.xpose.msra.mxu0 0.0
        %1545 = vmatpush.xpose.msra.mxu0 0.0
        %1546 = vmatpush.xpose.msra.mxu0 0.0
        %1547 = vmatpush.xpose.msra.mxu0 0.0
        %1548 = vmatpush.xpose.msra.mxu0 0.0
        %1549 = vmatpush.xpose.msra.mxu0 0.0
        %1550 = vmatpush.xpose.msra.mxu0 0.0
        %1551 = vmatpush.xpose.msra.mxu0 0.0
        %1552 = vmatpush.xpose.msra.mxu0 0.0
        %1553 = vmatpush.xpose.msra.mxu0 0.0
        %1554 = vmatpush.xpose.msra.mxu0 0.0
        %1555 = vmatpush.xpose.msra.mxu0 0.0
        %1556 = vmatpush.xpose.msra.mxu0 %v1540
        %1557 = vmatpush.xpose.msra.mxu0 %v1538
        %1558 = vmatmul.f32.gmra.mxu0 %v1534
        %v1559 = vpop.f32.mrf.mxu0
        %v1560 = vadd.f32 0.0, %v1559
        %1561 = vmatmul.f32.gmra.mxu0 %v1536
        %v1562 = vpop.f32.mrf.mxu0
        %v1563 = vadd.f32 0.0, %v1562
        %1564 = vdwg.mxu0
        %v1565 = vmul.f32 %v1560, 0.35355338
        %v1566 = vmul.f32 %v1563, 0.35355338
        %v1567 = vadd.f32 %v1565, %v541
        %v1568 = vadd.f32 %v1566, %v541
        %v1569 = vsel %vm545, %v1567, -inf
        %1570 = vmax.xlane.f32.xlu0 %v1569
        %v1571 = vpop.xlane.xlu0 %1570
        %v1572 = vsel %vm545, %v1568, -inf
        %1573 = vmax.xlane.f32.xlu0 %v1572
        %v1574 = vpop.xlane.xlu0 %1573
        %v1575 = vsub.f32 %v1567, %v1571
        %v1576 = vsub.f32 %v1568, %v1574
        %v1577 = vmul.f32 %v1575, 1.442695
        %v1578 = vpow.pop %v1577
        %v1579 = vmul.f32 %v1576, 1.442695
        %v1580 = vpow.pop %v1579
        %v1581 = vsel %vm545, %v1578, 0.0
        %1582 = vadd.xlane.f32.xlu0 %v1581
        %v1583 = vpop.xlane.xlu0 %1582
        %v1584 = vsel %vm545, %v1580, 0.0
        %1585 = vadd.xlane.f32.xlu0 %v1584
        %v1586 = vpop.xlane.xlu0 %1585
        %v1587 = vrcp.pop %v1583
        %v1588 = vrcp.pop %v1586
        %v1589 = vmul.f32 %v1578, %v1587
        %v1590 = vmul.f32 %v1580, %v1588
        %1591 = vrot.lane.b32.xlu0 %v1201, 40
        %v1592 = vpop.permute.xlu0 %1591
        %1593 = vrot.lane.b32.xlu0 %v1204, 40
        %v1594 = vpop.permute.xlu0 %1593
        %v1598 = vsel %vm545, %v1589, 0
        %v1601 = vsel %vm545, %v1590, 0
        %1603 = vmatpush.msra.mxu0 0.0
        %1604 = vmatpush.msra.mxu0 0.0
        %1605 = vmatpush.msra.mxu0 0.0
        %1606 = vmatpush.msra.mxu0 0.0
        %1607 = vmatpush.msra.mxu0 0.0
        %1608 = vmatpush.msra.mxu0 0.0
        %1609 = vmatpush.msra.mxu0 0.0
        %1610 = vmatpush.msra.mxu0 0.0
        %1611 = vmatpush.msra.mxu0 0.0
        %1612 = vmatpush.msra.mxu0 0.0
        %1613 = vmatpush.msra.mxu0 0.0
        %1614 = vmatpush.msra.mxu0 0.0
        %1615 = vmatpush.msra.mxu0 0.0
        %1616 = vmatpush.msra.mxu0 0.0
        %1617 = vmatpush.msra.mxu0 %v1594
        %1618 = vmatpush.msra.mxu0 %v1592
        %1619 = vmatmul.f32.gmra.mxu0 %v1598
        %v1620 = vpop.f32.mrf.mxu0
        %v1621 = vadd.f32 0.0, %v1620
        %1622 = vmatmul.f32.gmra.mxu0 %v1601
        %v1623 = vpop.f32.mrf.mxu0
        %v1624 = vadd.f32 0.0, %v1623
        %1625 = vdwg.mxu0
        %1628 = vrot.lane.b32.xlu0 %v1621, 24
        %v1629 = vpop.permute.xlu0 %1628
        %1630 = vrot.lane.b32.xlu0 %v1624, 24
        %v1631 = vpop.permute.xlu0 %1630
        %1634 = vst.msk [vmem:[#allocation2] sm:$0xff] %vm935, %v1629
        %1635 = vst.msk [vmem:[#allocation2 + $0x8] sm:$0xff] %vm935, %v1631
        %v1636 = vld [vmem:[#allocation2] sm:$0xff]
        %v1637 = vld [vmem:[#allocation2 + $0x8] sm:$0xff]
        %s1638 = scalar_lea.vmem %s6, 32
        %v1639 = vld [vmem:[%s1638] sm:$0xff]
        %v1640 = vld [vmem:[%s1638 + $0x8] sm:$0xff]
        %v1641 = vld [vmem:[%s1638 + $0x10] sm:$0xff]
        %v1642 = vld [vmem:[%s1638 + $0x18] sm:$0xff]
        %v1643 = vperm.slane %v1170, 1
        %v1645 = vsel %vm406, %v1636, 0
        %v1648 = vsel %vm406, %v1637, 0
        %1650 = vmatpush.msra.mxu0 0.0
        %1651 = vmatpush.msra.mxu0 0.0
        %1652 = vmatpush.msra.mxu0 0.0
        %1653 = vmatpush.msra.mxu0 0.0
        %1654 = vmatpush.msra.mxu0 0.0
        %1655 = vmatpush.msra.mxu0 0.0
        %1656 = vmatpush.msra.mxu0 0.0
        %1657 = vmatpush.msra.mxu0 0.0
        %1658 = vmatpush.msra.mxu0 0.0
        %1659 = vmatpush.msra.mxu0 0.0
        %1660 = vmatpush.msra.mxu0 0.0
        %1661 = vmatpush.msra.mxu0 0.0
        %1662 = vmatpush.msra.mxu0 %v1642
        %1663 = vmatpush.msra.mxu0 %v1641
        %1664 = vmatpush.msra.mxu0 %v1640
        %1665 = vmatpush.msra.mxu0 %v1639
        %1666 = vmatmul.f32.gmra.mxu0 %v1645
        %v1667 = vpop.f32.mrf.mxu0
        %v1668 = vadd.f32 %v1643, %v1667
        %1669 = vmatmul.f32.gmra.mxu0 %v1648
        %v1670 = vpop.f32.mrf.mxu0
        %v1671 = vadd.f32 %v1643, %v1670
        %1672 = vdwg.mxu0
        %v1673 = vadd.f32 %v1167, %v1668
        %v1674 = vadd.f32 %v1168, %v1671
        %v1675 = vsel %vm406, %v1673, 0.0
        %1676 = vadd.xlane.f32.xlu0 %v1675
        %v1677 = vpop.xlane.xlu0 %1676
        %v1678 = vsel %vm406, %v1674, 0.0
        %1679 = vadd.xlane.f32.xlu0 %v1678
        %v1680 = vpop.xlane.xlu0 %1679
        %v1681 = vmul.f32 %v1677, %v419
        %v1682 = vmul.f32 %v1680, %v419
        %v1683 = vsub.f32 %v1673, %v1681
        %v1684 = vsub.f32 %v1674, %v1682
        %v1685 = vmul.f32 %v1683, %v1683
        %v1686 = vmul.f32 %v1684, %v1684
        %v1687 = vsel %vm406, %v1685, 0.0
        %1688 = vadd.xlane.f32.xlu0 %v1687
        %v1689 = vpop.xlane.xlu0 %1688
        %v1690 = vsel %vm406, %v1686, 0.0
        %1691 = vadd.xlane.f32.xlu0 %v1690
        %v1692 = vpop.xlane.xlu0 %1691
        %v1693 = vmul.f32 %v1689, %v419
        %v1694 = vmul.f32 %v1692, %v419
        %v1695 = vadd.f32 %v1693, 1e-12
        %v1696 = vadd.f32 %v1694, 1e-12
        %v1697 = vrsqrt.pop %v1695
        %v1698 = vmul.f32 %v1697, %v1695
        %v1699 = vmul.f32 %v1698, %v1697
        %v1700 = vmul.f32 0.5, %v1699
        %v1701 = vsub.f32 1.5, %v1700
        %v1702 = vmul.f32 %v1697, %v1701
        %vm1703 = vweird.f32 %v1695
        %vm1704 = vweird.f32 %v1697
        %vm1705 = vmor %vm1703, %vm1704
        %v1706 = vsel %vm1705, %v1697, %v1702
        %v1707 = vrsqrt.pop %v1696
        %v1708 = vmul.f32 %v1707, %v1696
        %v1709 = vmul.f32 %v1708, %v1707
        %v1710 = vmul.f32 0.5, %v1709
        %v1711 = vsub.f32 1.5, %v1710
        %v1712 = vmul.f32 %v1707, %v1711
        %vm1713 = vweird.f32 %v1696
        %vm1714 = vweird.f32 %v1707
        %vm1715 = vmor %vm1713, %vm1714
        %v1716 = vsel %vm1715, %v1707, %v1712
        %v1717 = vmul.f32 %v1683, %v1706
        %v1718 = vmul.f32 %v1684, %v1716
        %v1719 = vperm.slane %v1170, 2
        %v1720 = vmul.f32 %v1717, %v1719
        %v1721 = vmul.f32 %v1718, %v1719
        %v1722 = vperm.slane %v1170, 3
        %v1723 = vadd.f32 %v1720, %v1722
        %v1724 = vadd.f32 %v1721, %v1722
        %s1725 = scalar_lea.vmem %s7, 32
        %v1726 = vld [vmem:[%s1725] sm:$0xff]
        %v1727 = vld [vmem:[%s1725 + $0x8] sm:$0xff]
        %v1728 = vld [vmem:[%s1725 + $0x10] sm:$0xff]
        %v1729 = vld [vmem:[%s1725 + $0x18] sm:$0xff]
        %v1730 = vperm.slane %v1170, 4
        %v1732 = vsel %vm406, %v1723, 0
        %v1735 = vsel %vm406, %v1724, 0
        %1737 = vmatpush.msra.mxu0 0.0
        %1738 = vmatpush.msra.mxu0 0.0
        %1739 = vmatpush.msra.mxu0 0.0
        %1740 = vmatpush.msra.mxu0 0.0
        %1741 = vmatpush.msra.mxu0 0.0
        %1742 = vmatpush.msra.mxu0 0.0
        %1743 = vmatpush.msra.mxu0 0.0
        %1744 = vmatpush.msra.mxu0 0.0
        %1745 = vmatpush.msra.mxu0 0.0
        %1746 = vmatpush.msra.mxu0 0.0
        %1747 = vmatpush.msra.mxu0 0.0
        %1748 = vmatpush.msra.mxu0 0.0
        %1749 = vmatpush.msra.mxu0 %v1729
        %1750 = vmatpush.msra.mxu0 %v1728
        %1751 = vmatpush.msra.mxu0 %v1727
        %1752 = vmatpush.msra.mxu0 %v1726
        %1753 = vmatmul.f32.gmra.mxu0 %v1732
        %v1754 = vpop.f32.mrf.mxu0
        %v1755 = vadd.f32 %v1730, %v1754
        %1756 = vmatmul.f32.gmra.mxu0 %v1735
        %v1757 = vpop.f32.mrf.mxu0
        %v1758 = vadd.f32 %v1730, %v1757
        %1759 = vdwg.mxu0
        %v1760 = vmul.f32 %v1755, %v1755
        %v1761 = vmul.f32 %v1758, %v1758
        %v1762 = vmul.f32 %v1755, %v1760
        %v1763 = vmul.f32 %v1758, %v1761
        %v1764 = vmul.f32 %v1762, 0.044715
        %v1765 = vmul.f32 %v1763, 0.044715
        %v1766 = vadd.f32 %v1755, %v1764
        %v1767 = vadd.f32 %v1758, %v1765
        %v1768 = vmul.f32 %v1766, 0.7978846
        %v1769 = vmul.f32 %v1767, 0.7978846
        %v1770 = vtanh.pop %v1768
        %v1771 = vtanh.pop %v1769
        %v1772 = vadd.f32 %v1770, 1.0
        %v1773 = vadd.f32 %v1771, 1.0
        %v1774 = vmul.f32 %v1772, 0.5
        %v1775 = vmul.f32 %v1773, 0.5
        %v1776 = vmul.f32 %v1755, %v1774
        %v1777 = vmul.f32 %v1758, %v1775
        %s1778 = scalar_lea.vmem %s8, 64
        %v1779 = vld [vmem:[%s1778] sm:$0xff]
        %v1780 = vld [vmem:[%s1778 + $0x8] sm:$0xff]
        %v1781 = vld [vmem:[%s1778 + $0x10] sm:$0xff]
        %v1782 = vld [vmem:[%s1778 + $0x18] sm:$0xff]
        %v1783 = vld [vmem:[%s1778 + $0x20] sm:$0xff]
        %v1784 = vld [vmem:[%s1778 + $0x28] sm:$0xff]
        %v1785 = vld [vmem:[%s1778 + $0x30] sm:$0xff]
        %v1786 = vld [vmem:[%s1778 + $0x38] sm:$0xff]
        %v1787 = vperm.slane %v1170, 5
        %v1789 = vsel %vm1087, %v1776, 0
        %v1792 = vsel %vm1087, %v1777, 0
        %1794 = vmatpush.msra.mxu0 0.0
        %1795 = vmatpush.msra.mxu0 0.0
        %1796 = vmatpush.msra.mxu0 0.0
        %1797 = vmatpush.msra.mxu0 0.0
        %1798 = vmatpush.msra.mxu0 0.0
        %1799 = vmatpush.msra.mxu0 0.0
        %1800 = vmatpush.msra.mxu0 0.0
        %1801 = vmatpush.msra.mxu0 0.0
        %1802 = vmatpush.msra.mxu0 %v1786
        %1803 = vmatpush.msra.mxu0 %v1785
        %1804 = vmatpush.msra.mxu0 %v1784
        %1805 = vmatpush.msra.mxu0 %v1783
        %1806 = vmatpush.msra.mxu0 %v1782
        %1807 = vmatpush.msra.mxu0 %v1781
        %1808 = vmatpush.msra.mxu0 %v1780
        %1809 = vmatpush.msra.mxu0 %v1779
        %1810 = vmatmul.f32.gmra.mxu0 %v1789
        %v1811 = vpop.f32.mrf.mxu0
        %v1812 = vadd.f32 %v1787, %v1811
        %1813 = vmatmul.f32.gmra.mxu0 %v1792
        %v1814 = vpop.f32.mrf.mxu0
        %v1815 = vadd.f32 %v1787, %v1814
        %1816 = vdwg.mxu0
        %v1817 = vadd.f32 %v1723, %v1812
        %v1818 = vadd.f32 %v1724, %v1815
        %v1819 = vsel %vm406, %v1817, 0.0
        %1820 = vadd.xlane.f32.xlu0 %v1819
        %v1821 = vpop.xlane.xlu0 %1820
        %v1822 = vsel %vm406, %v1818, 0.0
        %1823 = vadd.xlane.f32.xlu0 %v1822
        %v1824 = vpop.xlane.xlu0 %1823
        %v1825 = vmul.f32 %v1821, %v419
        %v1826 = vmul.f32 %v1824, %v419
        %v1827 = vsub.f32 %v1817, %v1825
        %v1828 = vsub.f32 %v1818, %v1826
        %v1829 = vmul.f32 %v1827, %v1827
        %v1830 = vmul.f32 %v1828, %v1828
        %v1831 = vsel %vm406, %v1829, 0.0
        %1832 = vadd.xlane.f32.xlu0 %v1831
        %v1833 = vpop.xlane.xlu0 %1832
        %v1834 = vsel %vm406, %v1830, 0.0
        %1835 = vadd.xlane.f32.xlu0 %v1834
        %v1836 = vpop.xlane.xlu0 %1835
        %v1837 = vmul.f32 %v1833, %v419
        %v1838 = vmul.f32 %v1836, %v419
        %v1839 = vadd.f32 %v1837, 1e-12
        %v1840 = vadd.f32 %v1838, 1e-12
        %v1841 = vrsqrt.pop %v1839
        %v1842 = vmul.f32 %v1841, %v1839
        %v1843 = vmul.f32 %v1842, %v1841
        %v1844 = vmul.f32 0.5, %v1843
        %v1845 = vsub.f32 1.5, %v1844
        %v1846 = vmul.f32 %v1841, %v1845
        %vm1847 = vweird.f32 %v1839
        %vm1848 = vweird.f32 %v1841
        %vm1849 = vmor %vm1847, %vm1848
        %v1850 = vsel %vm1849, %v1841, %v1846
        %v1851 = vrsqrt.pop %v1840
        %v1852 = vmul.f32 %v1851, %v1840
        %v1853 = vmul.f32 %v1852, %v1851
        %v1854 = vmul.f32 0.5, %v1853
        %v1855 = vsub.f32 1.5, %v1854
        %v1856 = vmul.f32 %v1851, %v1855
        %vm1857 = vweird.f32 %v1840
        %vm1858 = vweird.f32 %v1851
        %vm1859 = vmor %vm1857, %vm1858
        %v1860 = vsel %vm1859, %v1851, %v1856
        %v1861 = vmul.f32 %v1827, %v1850
        %v1862 = vmul.f32 %v1828, %v1860
        %v1863 = vperm.slane %v1170, 6
        %v1864 = vmul.f32 %v1861, %v1863
        %v1865 = vmul.f32 %v1862, %v1863
        %v1866 = vperm.slane %v1170, 7
        %v1867 = vadd.f32 %v1864, %v1866
        %v1868 = vadd.f32 %v1865, %v1866
        %v1869 = vld [vmem:[%s398] sm:$0xf]
        %v1871 = vsel %vm545, %v1869, 0
        %1873 = vmatpush.msra.mxu0 0.0
        %1874 = vmatpush.msra.mxu0 0.0
        %1875 = vmatpush.msra.mxu0 0.0
        %1876 = vmatpush.msra.mxu0 0.0
        %1877 = vmatpush.msra.mxu0 0.0
        %1878 = vmatpush.msra.mxu0 0.0
        %1879 = vmatpush.msra.mxu0 0.0
        %1880 = vmatpush.msra.mxu0 0.0
        %1881 = vmatpush.msra.mxu0 0.0
        %1882 = vmatpush.msra.mxu0 0.0
        %1883 = vmatpush.msra.mxu0 0.0
        %1884 = vmatpush.msra.mxu0 0.0
        %1885 = vmatpush.msra.mxu0 0.0
        %1886 = vmatpush.msra.mxu0 0.0
        %1887 = vmatpush.msra.mxu0 %v1868
        %1888 = vmatpush.msra.mxu0 %v1867
        %1889 = vmatmul.f32.gmra.mxu0 %v1871
        %v1890 = vpop.f32.mrf.mxu0
        %v1891 = vadd.f32 0.0, %v1890
        %1892 = vdwg.mxu0
        %v1893 = vld [vmem:[%s4 + $0x2] sm:$0x1]
        %v1894 = vld [vmem:[%s4 + $0x3] sm:$0x1]
        %1896 = vset.pattern.permute.xlu0 0
        %1897 = vperm.xlu0 %1896, %v1894
        %v1898 = vpop.permute.xlu0 %1897
        %v1901 = vsel %vm406, %v1893, 0
        %v1904 = vsel %vm406, %v1891, 0
        %1906 = vmatpush.xpose.msra.mxu0 0.0
        %1907 = vmatpush.xpose.msra.mxu0 0.0
        %1908 = vmatpush.xpose.msra.mxu0 0.0
        %1909 = vmatpush.xpose.msra.mxu0 0.0
        %1910 = vmatpush.xpose.msra.mxu0 0.0
        %1911 = vmatpush.xpose.msra.mxu0 0.0
        %1912 = vmatpush.xpose.msra.mxu0 0.0
        %1913 = vmatpush.xpose.msra.mxu0 0.0
        %1914 = vmatpush.xpose.msra.mxu0 0.0
        %1915 = vmatpush.xpose.msra.mxu0 0.0
        %1916 = vmatpush.xpose.msra.mxu0 0.0
        %1917 = vmatpush.xpose.msra.mxu0 0.0
        %1918 = vmatpush.xpose.msra.mxu0 0.0
        %1919 = vmatpush.xpose.msra.mxu0 0.0
        %1920 = vmatpush.xpose.msra.mxu0 0.0
        %1921 = vmatpush.xpose.msra.mxu0 %v1904
        %1922 = vmatmul.f32.gmra.mxu0 %v1901
        %v1923 = vpop.f32.mrf.mxu0
        %v1924 = vadd.f32 %v1898, %v1923
        %1925 = vdwg.mxu0
        %v1926 = vxor.u32 %v1924, 2147483648
        %v1927 = vmul.f32 %v1926, 1.442695
        %v1928 = vpow.pop %v1927
        %v1929 = vadd.f32 %v1928, 1.0
        %v1930 = vrcp.pop %v1929
        %v1931 = vmul.f32 %v1929, %v1930
        %v1932 = vsub.f32 1.0, %v1931
        %v1933 = vmul.f32 %v1930, %v1932
        %v1934 = vadd.f32 %v1930, %v1933
        %vm1935 = vweird.f32 %v1929
        %vm1936 = vweird.f32 %v1930
        %vm1937 = vmor %vm1935, %vm1936
        %v1938 = vsel %vm1937, %v1930, %v1934
        %v1939 = vand.u32 2147483647, %v1929
        %vm1940 = vcmp.eq.f32.partialorder %v1939, 8.507059e+37
        %v1941 = vand.u32 %v1929, 2147483648
        %v1942 = vor.u32 1.1754944e-38, %v1941
        %v1943 = vsel %vm1940, %v1942, %v1938
        %v1944 = vmul.f32 1.0, %v1943
        %v1945 = vld [vmem:[%s401] sm:$0x1]
        %v1946 = vmul.f32 %v1944, %v1945
        %vm1947 = vcmask 24576
        %1948 = vst.msk [vmem:[%s386] sm:$0x1] %vm1947, %v1946
        %s1949 = sand.u32 %s262, 1
        %s1950 = scalar_lea.sflag [#allocation4], %s1949
        %s1951 = sand.u32 %s262, 1
        %s1952 = scalar_lea.vmem [#allocation3], %s1951
        // Predicated region
        $region61: #{bert_summarizer_forward.1} parent=59 // pred_check
          %p1953 = pneg %p272
        $region62: #{bert_summarizer_forward.1} parent=59 // pred_check_branch
          %1955 = sbr.rel (%p1953) target = $region64
        $region63: #{bert_summarizer_forward.1} parent=59 // pred_region
          %1957 = vsyncadd %s1950, 0
          %s1958 = scalar_lea.hbm %s10, %s24
          %s1960 = sshll.u32 %s1952, 4
          %s1961 = int_to_ptr.vmem [resolvable:$true] %s1960
          %s1962 = sshll.u32 %s1958, 4
          %s1963 = int_to_ptr.hbm [resolvable:$true] %s1962
          %1965 = dma.vmem_to_hbm [thread:$0]  %s1961, 16, %s1963, %s1950
        $region64: #{bert_summarizer_forward.1} parent=59 // pred_fallthru
          _
      $region60: #{bert_summarizer_forward.1} parent=5 // pred_fallthru
        _
      %p1966 = scmp.le.s32.totalorder 2, %s19
      // Predicated region
      $region65: #{bert_summarizer_forward.1} parent=5 // pred_check
        %p1967 = pneg %p1966
      $region66: #{bert_summarizer_forward.1} parent=5 // pred_check_branch
        %1969 = sbr.rel (%p1967) target = $region68
      $region67: #{bert_summarizer_forward.1} parent=5 // pred_region
        %s1970 = ssub.s32 %s19, 2
        // Predicated region
        $region69: #{bert_summarizer_forward.1} parent=67 // pred_check
          %p1971 = pneg %p278
        $region70: #{bert_summarizer_forward.1} parent=67 // pred_check_branch
          %1973 = sbr.rel (%p1971) target = $region72
        $region71: #{bert_summarizer_forward.1} parent=67 // pred_region
          %s1974 = sand.u32 %s263, 1
          %s1975 = scalar_lea.sflag [#allocation4], %s1974
          %s1976 = sand.u32 %s263, 1
          %s1977 = scalar_lea.vmem [#allocation3], %s1976
          %1979 = dma.done %s1975, 16
        $region72: #{bert_summarizer_forward.1} parent=67 // pred_fallthru
          _
      $region68: #{bert_summarizer_forward.1} parent=5 // pred_fallthru
        _
    $region6: #{bert_summarizer_forward.1} parent=1 // loop_footer
      %s23 = sadd.s32 1, %s19
    $region7: #{bert_summarizer_forward.1} parent=1 // loop_footer_branch
      %18 = sbr.rel target = $region3
    $region8: #{bert_summarizer_forward.1} parent=1 // loop_exit
      _
    %1980 = vsyncpa [#allocation4], 1
    %s1981 = scalar_lea.sflag [#allocation4], 1
    %1982 = vsyncpa %s1981, 1

</llo_original>
